<compile_context>
chip_gen: v6e
topology: v6e:2x2x1
jax: 0.10.0
libtpu: 0.0.40
codegen_flags: <defaults>
</compile_context>

<pallas_src>
import functools
from math import exp, log, log1p

import jax
import jax.numpy as jnp
from jax import lax
from jax.experimental import pallas as pl
from jax.experimental.pallas import tpu as pltpu


# -----------------------------------------------------------------------------
# Host-side helpers (parameter folding, xPos tables, decay constants).
# -----------------------------------------------------------------------------
def init_params(key, embed_dim):
    """xavier_normal_ weights, zero biases (PyTorch nn.Linear convention: W is
    (out,in), y = x @ W.T + b) -- mirrors MultiScaleRetention._reset_parameters."""
    std = (2.0 / (embed_dim + embed_dim)) ** 0.5
    ks = jax.random.split(key, 5)
    w = lambda k: std * jax.random.normal(k, (embed_dim, embed_dim), dtype=jnp.float32)
    b = jnp.zeros((1, embed_dim), dtype=jnp.float32)
    return dict(wq=w(ks[0]), bq=b, wk=w(ks[1]), bk=b, wv=w(ks[2]), bv=b,
                wg=w(ks[3]), bg=b, wo=w(ks[4]), bo=b)


def _fold_params(params, head_dim):
    """Pre-transpose, fuse (q|g) and fold the 1/sqrt(head_dim) key scale (host side)."""
    scale = float(head_dim) ** 0.5
    w_qg_t = jnp.concatenate([params["wq"].T, params["wg"].T], axis=1).astype(jnp.bfloat16)  # (E,2E)
    b_qg = jnp.concatenate([params["bq"], params["bg"]], axis=1).astype(jnp.float32)         # (1,2E)
    w_k_t = (params["wk"].T / scale).astype(jnp.bfloat16)                                    # (E,E)
    w_v_t = params["wv"].T.astype(jnp.bfloat16)                                              # (E,E)
    w_o_t = params["wo"].T.astype(jnp.bfloat16)                                              # (E,E)
    b_kv = jnp.concatenate([params["bk"] / scale, params["bv"]], axis=0).astype(jnp.float32) # (2,E)
    b_o = params["bo"].astype(jnp.float32)                                                   # (1,E)
    return w_qg_t, b_qg, w_k_t, w_v_t, b_kv, w_o_t, b_o


def _build_xpos_tables(n, num_heads, head_dim, scale=10000.0):
    """sin/cos tables for the xPos theta shift; the _multiply_by_i sign pattern
    (-x[2i+1] at even cols, +x[2i] at odd cols) is folded into the sin table."""
    x = jnp.linspace(0.0, 1.0, head_dim // 2, dtype=jnp.float32)
    thetas = jnp.repeat(1.0 / scale ** x, 2)          # 'd -> (d n)', n=2
    thetas = jnp.tile(thetas, num_heads)              # identical pattern per head -> (E,)
    angles = jnp.arange(n, dtype=jnp.float32)[:, None] * thetas[None, :]
    sin, cos = jnp.sin(angles), jnp.cos(angles)
    sign = jnp.where(jnp.arange(num_heads * head_dim) % 2 == 0, -1.0, 1.0)
    return (sin * sign[None, :]).astype(jnp.float32), cos.astype(jnp.float32)


def _decay_log_gammas(num_heads):
    """log(gamma_h) as compile-time Python floats; gamma_h = 1 - exp(linspace(...))."""
    lo, hi = log(1.0 / 32.0), log(1.0 / 512.0)
    xs = [lo] if num_heads == 1 else [lo + (hi - lo) * i / (num_heads - 1) for i in range(num_heads)]
    return tuple(log1p(-exp(x)) for x in xs)


def _vmem_limit_bytes(est_bytes):
    """Generation-aware scoped-VMEM limit (v7x has 64 MiB/TC, v5e/v6e 128 MiB)."""
    try:
        cap = int(pltpu.get_tpu_info().vmem_capacity_bytes)
    except Exception:  # pragma: no cover - conservative fallback (v7x per-TC VMEM)
        cap = 64 * 1024 * 1024
    cap = (cap * 3) // 4                       # headroom for compiler-internal scratch
    floor = min(32 * 1024 * 1024, cap)
    return int(max(min(int(est_bytes), cap), floor))


# -----------------------------------------------------------------------------
# Pass 1: q/g/k/v projections + xPos rotation, once per token.
# -----------------------------------------------------------------------------
def _proj_kernel(xq_ref, xk_ref, xv_ref,
                 w_qg_ref, b_qg_ref, w_k_ref, w_v_ref, b_kv_ref,
                 sin_ref, cos_ref,
                 q_out_ref, g_out_ref, k_out_ref, v_out_ref, *, embed_dim):
    f32, bf16 = jnp.float32, jnp.bfloat16
    e = embed_dim
    xq = xq_ref[0]                     # (T, E) bf16
    xk = xk_ref[0]
    xv = xv_ref[0]

    # Fused query/gate projection: one (T,E)x(E,2E) bf16 MXU matmul, f32 accumulate.
    qg = jnp.dot(xq, w_qg_ref[...], preferred_element_type=f32) + b_qg_ref[...]
    q, g = qg[:, :e], qg[:, e:]
    # Key (1/sqrt(d) folded into weights/bias) and value projections -- computed ONCE
    # per token here (hoisted out of the per-query-tile retention kernel).
    k = jnp.dot(xk, w_k_ref[...], preferred_element_type=f32) + b_kv_ref[0:1, :]
    v = jnp.dot(xv, w_v_ref[...], preferred_element_type=f32) + b_kv_ref[1:2, :]

    # xPos theta shift.  multiply_by_i == pairwise lane swap (sign folded into the
    # pre-signed sin table) -- pure VPU work, no (E,E) rotation matmul.
    sin = sin_ref[...]
    cos = cos_ref[...]
    even = (lax.broadcasted_iota(jnp.int32, (1, e), 1) % 2) == 0

    def pairwise_swap(x):
        # TODO(synk): pltpu.roll(x, +/-1, axis=-1) would put this on the (idle) XLU;
        # slice+concat kept for lowering robustness -- this path now runs only once
        # per token inside the cheap projection pass.
        left = jnp.concatenate([x[:, 1:], x[:, :1]], axis=-1)     # x[:, j+1]
        right = jnp.concatenate([x[:, -1:], x[:, :-1]], axis=-1)  # x[:, j-1]
        return jnp.where(even, left, right)

    q = q * cos + pairwise_swap(q) * sin
    k = k * cos + pairwise_swap(k) * sin

    q_out_ref[0] = q.astype(bf16)
    g_out_ref[0] = g.astype(g_out_ref.dtype)
    k_out_ref[0] = k.astype(bf16)
    v_out_ref[0] = v.astype(bf16)


# -----------------------------------------------------------------------------
# Pass 2: streamed, causally-skipped retention + GroupNorm + gate + out_proj.
# -----------------------------------------------------------------------------
def _retention_kernel(q_ref, g_ref, k_ref, v_ref, w_o_ref, b_o_ref, out_ref, acc_ref,
                      *, num_heads, head_dim, eps, log_gammas, tile):
    f32, bf16 = jnp.float32, jnp.bfloat16
    qi = pl.program_id(1)
    ki = pl.program_id(2)
    nk = pl.num_programs(2)
    tq = tk = tile

    @pl.when(ki == 0)
    def _init():
        acc_ref[...] = jnp.zeros_like(acc_ref)

    # Causal tile skip: KV tiles strictly above the diagonal contribute nothing.
    # Their DMAs are also suppressed by the clamped KV index_map in the wrapper.
    @pl.when(ki <= qi)
    def _compute():
        q = q_ref[0]          # (tq, E) bf16, already rotated
        k = k_ref[0]          # (tk, E) bf16, already rotated + 1/sqrt(d)-scaled
        v = v_ref[0]          # (tk, E) bf16

        q_start = qi * tq
        kv_start = ki * tk
        off = (q_start - kv_start)                 # >= 0 for computed (causal) tiles

        # Rank-1 decay factorization: gamma^(i-j) = gamma^(i-kv0) * gamma^(kv0-j).
        # Row exponent >= 0 and col exponent in (-(tk-1), 0], so both factors are
        # finite (bounded by gamma^-(tk-1)) -- no inf/NaN even before the mask.
        row_e = (lax.broadcasted_iota(jnp.int32, (tq, 1), 0) + off).astype(f32)
        col_e = (-lax.broadcasted_iota(jnp.int32, (1, tk), 1)).astype(f32)
        causal = (lax.broadcasted_iota(jnp.int32, (tq, tk), 0) + off) >= \
                 lax.broadcasted_iota(jnp.int32, (tq, tk), 1)

        head_outs = []
        # TODO(synk): for num_heads >= ~4, pack heads into one lane-dense batched
        # dot_general (or a lax.fori_loop writing at head offsets) to fill the
        # 256-wide MXU and bound live ranges; the unrolled loop is fine for small H.
        for h in range(num_heads):
            lo = h * head_dim
            hi = lo + head_dim
            sim = lax.dot_general(q[:, lo:hi], k[:, lo:hi], (((1,), (1,)), ((), ())),
                                  preferred_element_type=f32)            # (tq, tk)
            lg = log_gammas[h]
            row_f = jnp.exp(row_e * lg)       # (tq,1)  -- EUP cost O(tq+tk) per head
            col_f = jnp.exp(col_e * lg)       # (1,tk)
            sim = jnp.where(causal, sim * row_f * col_f, 0.0)
            head_outs.append(jnp.dot(sim.astype(bf16), v[:, lo:hi],
                                     preferred_element_type=f32))        # (tq, d)
        acc_ref[...] += jnp.concatenate(head_outs, axis=-1)              # lane-dense (tq,E)

    @pl.when(ki == nk - 1)
    def _finalize():
        ret = acc_ref[...]                                               # (tq, E) f32
        # GroupNorm(num_groups=H, num_channels=H, affine=False): per-row, per-head.
        normed = []
        for h in range(num_heads):
            r = ret[:, h * head_dim:(h + 1) * head_dim]
            mean = jnp.mean(r, axis=-1, keepdims=True)
            var = jnp.mean((r - mean) ** 2, axis=-1, keepdims=True)
            normed.append((r - mean) * lax.rsqrt(var + eps))
        ret_n = jnp.concatenate(normed, axis=-1)
        g = g_ref[0]                                                     # (tq, E) f32
        gate = g * jax.nn.sigmoid(g)                                     # swish
        gated = (ret_n * gate).astype(bf16)
        out = jnp.dot(gated, w_o_ref[...], preferred_element_type=f32) + b_o_ref[...]
        out_ref[0] = out.astype(out_ref.dtype)


# -----------------------------------------------------------------------------
# Wrapper: padding, grids, BlockSpecs, VMEM budgets, cost estimates.
# -----------------------------------------------------------------------------
def multi_scale_retention(xq, xk, xv, params, *, num_heads, eps=1e-6, tile=128,
                          out_dtype=jnp.float32):
    B, N, E = xq.shape
    assert xk.shape == (B, N, E) and xv.shape == (B, N, E)
    assert E % num_heads == 0
    head_dim = E // num_heads
    assert head_dim % 8 == 0

    # Pad the sequence to a tile multiple (no tq=N fallback).  Padded key rows sit
    # strictly after every real query so the causal mask kills them; padded query
    # rows are sliced off at the end.
    n_pad = ((N + tile - 1) // tile) * tile
    if n_pad != N:
        pad = ((0, 0), (0, n_pad - N), (0, 0))
        xq, xk, xv = (jnp.pad(a, pad) for a in (xq, xk, xv))
    nt = n_pad // tile

    w_qg_t, b_qg, w_k_t, w_v_t, b_kv, w_o_t, b_o = _fold_params(params, head_dim)
    sin_s, cos = _build_xpos_tables(n_pad, num_heads, head_dim)
    log_gammas = _decay_log_gammas(num_heads)

    xq_b = xq.astype(jnp.bfloat16)
    xk_b = xk.astype(jnp.bfloat16)
    xv_b = xv.astype(jnp.bfloat16)

    const = lambda shape: pl.BlockSpec(shape, lambda *idx: (0,) * len(shape))
    bb, bf = 2, 4  # bytes per bf16 / f32

    # ---------------- Pass 1: projections + rotation ----------------
    est1 = 2 * (3 * tile * E * bb                      # xq/xk/xv tiles (double-buffered)
                + 4 * E * E * bb                       # w_qg (E,2E) + w_k + w_v
                + 6 * E * bf                           # biases
                + 2 * tile * E * bf                    # sin/cos tiles
                + 3 * tile * E * bb + tile * E * bf)   # q/k/v (bf16) + g (f32) out tiles
    est1 += 10 * tile * E * bf                         # f32 intermediates / relayout slack
    ce1 = pl.CostEstimate(
        flops=int(8 * B * n_pad * E * E),
        transcendentals=0,
        bytes_accessed=int(B * n_pad * E * (3 * bb + 3 * bb + bf)
                           + 4 * E * E * bb + 2 * n_pad * E * bf + 6 * E * bf))

    q_r, g_p, k_r, v_p = pl.pallas_call(
        functools.partial(_proj_kernel, embed_dim=E),
        out_shape=(jax.ShapeDtypeStruct((B, n_pad, E), jnp.bfloat16),   # q (rotated)
                   jax.ShapeDtypeStruct((B, n_pad, E), jnp.float32),    # g (gate pre-act)
                   jax.ShapeDtypeStruct((B, n_pad, E), jnp.bfloat16),   # k (scaled+rotated)
                   jax.ShapeDtypeStruct((B, n_pad, E), jnp.bfloat16)),  # v
        grid_spec=pltpu.PrefetchScalarGridSpec(
            num_scalar_prefetch=0,
            grid=(B, nt),
            in_specs=[
                pl.BlockSpec((1, tile, E), lambda b, i: (b, i, 0)),   # xq tile
                pl.BlockSpec((1, tile, E), lambda b, i: (b, i, 0)),   # xk tile
                pl.BlockSpec((1, tile, E), lambda b, i: (b, i, 0)),   # xv tile
                const((E, 2 * E)),                                     # [wq | wg]^T (bf16)
                const((1, 2 * E)),                                     # [bq | bg]
                const((E, E)),                                         # wk^T / sqrt(d)
                const((E, E)),                                         # wv^T
                const((2, E)),                                         # [bk/sqrt(d); bv]
                pl.BlockSpec((tile, E), lambda b, i: (i, 0)),          # signed sin tile
                pl.BlockSpec((tile, E), lambda b, i: (i, 0)),          # cos tile
            ],
            out_specs=[pl.BlockSpec((1, tile, E), lambda b, i: (b, i, 0))] * 4,
        ),
        compiler_params=pltpu.CompilerParams(
            dimension_semantics=("parallel", "parallel"),
            vmem_limit_bytes=_vmem_limit_bytes(est1),
        ),
        cost_estimate=ce1,
    )(xq_b, xk_b, xv_b, w_qg_t, b_qg, w_k_t, w_v_t, b_kv, sin_s, cos)

    # ---------------- Pass 2: streamed causal retention ----------------
    # KV index map clamped at the diagonal: above-diagonal steps keep the same block
    # index, so no fresh DMA is issued for tiles whose compute is skipped.
    kv_index = lambda b, qi, ki: (b, jnp.minimum(ki, qi), 0)

    est2 = 2 * (tile * E * bb + tile * E * bf          # q (bf16) + g (f32) tiles
                + 2 * tile * E * bb                    # k + v tiles
                + E * E * bb + E * bf                  # w_o + b_o
                + tile * E * bf)                       # output tile
    est2 += tile * E * bf                              # accumulator scratch
    est2 += (num_heads + 6) * tile * tile * bf + 6 * tile * E * bf   # sim/decay/ret slack

    n_causal = nt * (nt + 1) // 2
    ce2 = pl.CostEstimate(
        flops=int(B * (4 * n_causal * tile * tile * E + 2 * n_pad * E * E)),
        transcendentals=int(B * (n_causal * num_heads * 2 * tile + n_pad * E)),
        bytes_accessed=int(B * n_pad * E * (bb + bf + bb + bb + bf) + E * E * bb + E * bf))

    out_padded = pl.pallas_call(
        functools.partial(_retention_kernel, num_heads=num_heads, head_dim=head_dim,
                          eps=eps, log_gammas=log_gammas, tile=tile),
        out_shape=jax.ShapeDtypeStruct((B, n_pad, E), out_dtype),
        grid_spec=pltpu.PrefetchScalarGridSpec(
            num_scalar_prefetch=0,
            grid=(B, nt, nt),                        # (batch, q tile, kv tile[reduction])
            in_specs=[
                pl.BlockSpec((1, tile, E), lambda b, qi, ki: (b, qi, 0)),   # q tile
                pl.BlockSpec((1, tile, E), lambda b, qi, ki: (b, qi, 0)),   # gate tile
                pl.BlockSpec((1, tile, E), kv_index),                        # k tile (streamed)
                pl.BlockSpec((1, tile, E), kv_index),                        # v tile (streamed)
                const((E, E)),                                               # wo^T (bf16)
                const((1, E)),                                               # bo
            ],
            out_specs=pl.BlockSpec((1, tile, E), lambda b, qi, ki: (b, qi, 0)),
            scratch_shapes=[pltpu.VMEM((tile, E), jnp.float32)],             # accumulator
        ),
        compiler_params=pltpu.CompilerParams(
            dimension_semantics=("parallel", "parallel", "arbitrary"),
            vmem_limit_bytes=_vmem_limit_bytes(est2),
        ),
        cost_estimate=ce2,
    )(q_r, g_p, k_r, v_p, w_o_t, b_o)

    return out_padded[:, :N, :]


# -----------------------------------------------------------------------------
# Pure-JAX reference: mirrors MultiScaleRetention.forward_parallel with the same
# folded parameters and the same bf16-matmul / f32-accumulate precision choices
# as the kernel, so the comparison is tight.
# -----------------------------------------------------------------------------
def _reference(xq, xk, xv, params, *, num_heads, eps=1e-6):
    B, N, E = xq.shape
    d = E // num_heads
    w_qg_t, b_qg, w_k_t, w_v_t, b_kv, w_o_t, b_o = _fold_params(params, d)
    sin_s, cos = _build_xpos_tables(N, num_heads, d)
    log_gammas = jnp.asarray(_decay_log_gammas(num_heads), dtype=jnp.float32)

    dot = lambda a, b: jnp.dot(a.astype(jnp.bfloat16), b, preferred_element_type=jnp.float32)
    qg = dot(xq, w_qg_t) + b_qg
    q, g = qg[..., :E], qg[..., E:]
    k = dot(xk, w_k_t) + b_kv[0:1]
    v = dot(xv, w_v_t) + b_kv[1:2]

    def swap(t):                      # pairwise swap (== multiply_by_i without the sign)
        tr = t.reshape(*t.shape[:-1], E // 2, 2)
        return jnp.flip(tr, axis=-1).reshape(t.shape)

    q = (q * cos + swap(q) * sin_s).astype(jnp.bfloat16)
    k = (k * cos + swap(k) * sin_s).astype(jnp.bfloat16)
    v = v.astype(jnp.bfloat16)

    split = lambda t: t.reshape(B, N, num_heads, d).transpose(0, 2, 1, 3)
    qh, kh, vh = split(q), split(k), split(v)

    pos = jnp.arange(N, dtype=jnp.float32)
    dist = pos[:, None] - pos[None, :]
    decay = jnp.where(dist[None] >= 0,
                      jnp.exp(jnp.maximum(dist[None], 0.0) * log_gammas[:, None, None]),
                      0.0)                                           # (H, N, N)

    sim = jnp.einsum("bhnd,bhsd->bhns", qh, kh, preferred_element_type=jnp.float32)
    sim = sim * decay[None]
    ret = jnp.einsum("bhns,bhsd->bhnd", sim.astype(jnp.bfloat16), vh,
                     preferred_element_type=jnp.float32)
    mean = ret.mean(-1, keepdims=True)
    var = ((ret - mean) ** 2).mean(-1, keepdims=True)
    ret = (ret - mean) * lax.rsqrt(var + eps)
    ret = ret.transpose(0, 2, 1, 3).reshape(B, N, E)

    gate = g * jax.nn.sigmoid(g)
    return dot(ret * gate, w_o_t) + b_o


if __name__ == "__main__":
    # head_dim = 64 (divisible by 8); N deliberately NOT a multiple of 128 to
    # exercise the host-side padding + causal-tile-skip paths (2 q-tiles x 2 kv-tiles).
    B, N, E, H = 2, 200, 128, 2
    key = jax.random.PRNGKey(0)
    kp, kq, kk, kv = jax.random.split(key, 4)

    params = init_params(kp, E)
    xq = jax.random.normal(kq, (B, N, E), dtype=jnp.float32)
    xk = jax.random.normal(kk, (B, N, E), dtype=jnp.float32)
    xv = jax.random.normal(kv, (B, N, E), dtype=jnp.float32)

    out = multi_scale_retention(xq, xk, xv, params, num_heads=H)
    out = jax.block_until_ready(out)

    ref = _reference(xq, xk, xv, params, num_heads=H)
    if not jnp.allclose(out, ref, atol=2e-2, rtol=2e-2):
        max_err = float(jnp.max(jnp.abs(out - ref)))
        raise AssertionError(f"Pallas kernel output mismatch (max abs err {max_err:.3e})")

    print("KERNEL_OK")
</pallas_src>

<mosaic_0001>
module attributes {stable_mosaic.version = 11 : i64} {
  func.func @_proj_kernel(%arg0: i32, %arg1: i32, %arg2: memref<1x128x128xbf16, #tpu.memory_space<vmem>>, %arg3: memref<1x128x128xbf16, #tpu.memory_space<vmem>>, %arg4: memref<1x128x128xbf16, #tpu.memory_space<vmem>>, %arg5: memref<128x256xbf16, #tpu.memory_space<vmem>>, %arg6: memref<1x256xf32, #tpu.memory_space<vmem>>, %arg7: memref<128x128xbf16, #tpu.memory_space<vmem>>, %arg8: memref<128x128xbf16, #tpu.memory_space<vmem>>, %arg9: memref<2x128xf32, #tpu.memory_space<vmem>>, %arg10: memref<128x128xf32, #tpu.memory_space<vmem>>, %arg11: memref<128x128xf32, #tpu.memory_space<vmem>>, %arg12: memref<1x128x128xbf16, #tpu.memory_space<vmem>>, %arg13: memref<1x128x128xf32, #tpu.memory_space<vmem>>, %arg14: memref<1x128x128xbf16, #tpu.memory_space<vmem>>, %arg15: memref<1x128x128xbf16, #tpu.memory_space<vmem>>) attributes {dimension_semantics = [#tpu.dimension_semantics<parallel>, #tpu.dimension_semantics<parallel>], iteration_bounds = array<i64: 2, 2>, scalar_prefetch = 0 : i64, scratch_operands = 0 : i64, tpu.core_type = #tpu.core_type<tc>, window_params = [{transform_indices = @transform_0, window_bounds = array<i64: 1, 128, 128>}, {transform_indices = @transform_1, window_bounds = array<i64: 1, 128, 128>}, {transform_indices = @transform_2, window_bounds = array<i64: 1, 128, 128>}, {pipeline_mode = #tpu.pipeline_mode<synchronous>, transform_indices = @transform_3, window_bounds = array<i64: 128, 256>}, {pipeline_mode = #tpu.pipeline_mode<synchronous>, transform_indices = @transform_4, window_bounds = array<i64: 1, 256>}, {pipeline_mode = #tpu.pipeline_mode<synchronous>, transform_indices = @transform_5, window_bounds = array<i64: 128, 128>}, {pipeline_mode = #tpu.pipeline_mode<synchronous>, transform_indices = @transform_6, window_bounds = array<i64: 128, 128>}, {pipeline_mode = #tpu.pipeline_mode<synchronous>, transform_indices = @transform_7, window_bounds = array<i64: 2, 128>}, {transform_indices = @transform_8, window_bounds = array<i64: 128, 128>}, {transform_indices = @transform_9, window_bounds = array<i64: 128, 128>}, {transform_indices = @transform_10, window_bounds = array<i64: 1, 128, 128>}, {transform_indices = @transform_11, window_bounds = array<i64: 1, 128, 128>}, {transform_indices = @transform_12, window_bounds = array<i64: 1, 128, 128>}, {transform_indices = @transform_13, window_bounds = array<i64: 1, 128, 128>}]} {
    %c0 = arith.constant 0 : index
    %c0_0 = arith.constant 0 : index
    %c0_1 = arith.constant 0 : index
    %0 = vector.load %arg2[%c0, %c0_0, %c0_1] : memref<1x128x128xbf16, #tpu.memory_space<vmem>>, vector<1x128x128xbf16>
    %1 = vector.shape_cast %0 : vector<1x128x128xbf16> to vector<128x128xbf16>
    %c0_2 = arith.constant 0 : index
    %c0_3 = arith.constant 0 : index
    %c0_4 = arith.constant 0 : index
    %2 = vector.load %arg3[%c0_2, %c0_3, %c0_4] : memref<1x128x128xbf16, #tpu.memory_space<vmem>>, vector<1x128x128xbf16>
    %3 = vector.shape_cast %2 : vector<1x128x128xbf16> to vector<128x128xbf16>
    %c0_5 = arith.constant 0 : index
    %c0_6 = arith.constant 0 : index
    %c0_7 = arith.constant 0 : index
    %4 = vector.load %arg4[%c0_5, %c0_6, %c0_7] : memref<1x128x128xbf16, #tpu.memory_space<vmem>>, vector<1x128x128xbf16>
    %5 = vector.shape_cast %4 : vector<1x128x128xbf16> to vector<128x128xbf16>
    %c0_8 = arith.constant 0 : index
    %c0_9 = arith.constant 0 : index
    %6 = vector.load %arg5[%c0_8, %c0_9] : memref<128x256xbf16, #tpu.memory_space<vmem>>, vector<128x256xbf16>
    %cst = arith.constant dense<0.000000e+00> : vector<128x256xf32>
    %7 = tpu.matmul %1, %6, %cst {dimension_numbers = #tpu.dot_dimension_numbers<[1], [0], [0], [1], [0, 0, 1, 1], [], []>} : vector<128x128xbf16>, vector<128x256xbf16>, vector<128x256xf32> -> vector<128x256xf32>
    %c0_10 = arith.constant 0 : index
    %c0_11 = arith.constant 0 : index
    %8 = vector.load %arg6[%c0_10, %c0_11] : memref<1x256xf32, #tpu.memory_space<vmem>>, vector<1x256xf32>
    %9 = vector.broadcast %8 : vector<1x256xf32> to vector<128x256xf32>
    %10 = arith.addf %7, %9 : vector<128x256xf32>
    %11 = vector.extract_strided_slice %10 {offsets = [0, 0], sizes = [128, 128], strides = [1, 1]} : vector<128x256xf32> to vector<128x128xf32>
    %12 = vector.extract_strided_slice %10 {offsets = [0, 128], sizes = [128, 128], strides = [1, 1]} : vector<128x256xf32> to vector<128x128xf32>
    %c0_12 = arith.constant 0 : index
    %c0_13 = arith.constant 0 : index
    %13 = vector.load %arg7[%c0_12, %c0_13] : memref<128x128xbf16, #tpu.memory_space<vmem>>, vector<128x128xbf16>
    %cst_14 = arith.constant dense<0.000000e+00> : vector<128x128xf32>
    %14 = tpu.matmul %3, %13, %cst_14 {dimension_numbers = #tpu.dot_dimension_numbers<[1], [0], [0], [1], [0, 0, 1, 1], [], []>} : vector<128x128xbf16>, vector<128x128xbf16>, vector<128x128xf32> -> vector<128x128xf32>
    %c0_15 = arith.constant 0 : index
    %c0_16 = arith.constant 0 : index
    %15 = vector.load %arg9[%c0_15, %c0_16] : memref<2x128xf32, #tpu.memory_space<vmem>>, vector<1x128xf32>
    %16 = vector.broadcast %15 : vector<1x128xf32> to vector<128x128xf32>
    %17 = arith.addf %14, %16 : vector<128x128xf32>
    %c0_17 = arith.constant 0 : index
    %c0_18 = arith.constant 0 : index
    %18 = vector.load %arg8[%c0_17, %c0_18] : memref<128x128xbf16, #tpu.memory_space<vmem>>, vector<128x128xbf16>
    %cst_19 = arith.constant dense<0.000000e+00> : vector<128x128xf32>
    %19 = tpu.matmul %5, %18, %cst_19 {dimension_numbers = #tpu.dot_dimension_numbers<[1], [0], [0], [1], [0, 0, 1, 1], [], []>} : vector<128x128xbf16>, vector<128x128xbf16>, vector<128x128xf32> -> vector<128x128xf32>
    %c1 = arith.constant 1 : index
    %c0_20 = arith.constant 0 : index
    %20 = vector.load %arg9[%c1, %c0_20] : memref<2x128xf32, #tpu.memory_space<vmem>>, vector<1x128xf32>
    %21 = vector.broadcast %20 : vector<1x128xf32> to vector<128x128xf32>
    %22 = arith.addf %19, %21 : vector<128x128xf32>
    %c0_21 = arith.constant 0 : index
    %c0_22 = arith.constant 0 : index
    %23 = vector.load %arg10[%c0_21, %c0_22] : memref<128x128xf32, #tpu.memory_space<vmem>>, vector<128x128xf32>
    %c0_23 = arith.constant 0 : index
    %c0_24 = arith.constant 0 : index
    %24 = vector.load %arg11[%c0_23, %c0_24] : memref<128x128xf32, #tpu.memory_space<vmem>>, vector<128x128xf32>
    %25 = tpu.iota {dimensions = array<i32: 1>} : vector<1x128xi32>
    %c2_i32 = arith.constant 2 : i32
    %c0_i32 = arith.constant 0 : i32
    %26 = arith.cmpi eq, %c2_i32, %c0_i32 : i32
    %c1_i32 = arith.constant 1 : i32
    %27 = arith.select %26, %c1_i32, %c2_i32 : i32
    %28 = vector.broadcast %27 : i32 to vector<1x128xi32>
    %29 = arith.remsi %25, %28 : vector<1x128xi32>
    %c0_i32_25 = arith.constant 0 : i32
    %30 = vector.broadcast %c0_i32_25 : i32 to vector<1x128xi32>
    %31 = arith.cmpi ne, %29, %30 : vector<1x128xi32>
    %c0_i32_26 = arith.constant 0 : i32
    %32 = vector.broadcast %c0_i32_26 : i32 to vector<1x128xi32>
    %33 = arith.cmpi slt, %29, %32 : vector<1x128xi32>
    %c0_i32_27 = arith.constant 0 : i32
    %34 = arith.cmpi slt, %27, %c0_i32_27 : i32
    %35 = vector.broadcast %34 : i1 to vector<1x128xi1>
    %36 = vector.broadcast %35 : vector<1x128xi1> to vector<1x128xi1>
    %37 = arith.xori %33, %36 : vector<1x128xi1>
    %38 = arith.andi %37, %31 : vector<1x128xi1>
    %39 = vector.broadcast %27 : i32 to vector<1x128xi32>
    %40 = arith.addi %29, %39 : vector<1x128xi32>
    %41 = arith.select %38, %40, %29 : vector<1x128xi1>, vector<1x128xi32>
    %c0_i32_28 = arith.constant 0 : i32
    %42 = vector.broadcast %c0_i32_28 : i32 to vector<1x128xi32>
    %43 = arith.cmpi eq, %41, %42 : vector<1x128xi32>
    %44 = arith.mulf %11, %24 : vector<128x128xf32>
    %45 = vector.extract_strided_slice %11 {offsets = [0, 1], sizes = [128, 127], strides = [1, 1]} : vector<128x128xf32> to vector<128x127xf32>
    %46 = vector.extract_strided_slice %11 {offsets = [0, 0], sizes = [128, 1], strides = [1, 1]} : vector<128x128xf32> to vector<128x1xf32>
    %47 = tpu.concatenate %45, %46 in 1 : vector<128x127xf32>, vector<128x1xf32> -> vector<128x128xf32>
    %48 = vector.extract_strided_slice %11 {offsets = [0, 127], sizes = [128, 1], strides = [1, 1]} : vector<128x128xf32> to vector<128x1xf32>
    %49 = vector.extract_strided_slice %11 {offsets = [0, 0], sizes = [128, 127], strides = [1, 1]} : vector<128x128xf32> to vector<128x127xf32>
    %50 = tpu.concatenate %48, %49 in 1 : vector<128x1xf32>, vector<128x127xf32> -> vector<128x128xf32>
    %51 = vector.shape_cast %43 : vector<1x128xi1> to vector<1x128xi1>
    %52 = vector.broadcast %51 : vector<1x128xi1> to vector<128x128xi1>
    %53 = arith.select %52, %47, %50 : vector<128x128xi1>, vector<128x128xf32>
    %54 = arith.mulf %53, %23 : vector<128x128xf32>
    %55 = arith.addf %44, %54 : vector<128x128xf32>
    %56 = arith.mulf %17, %24 : vector<128x128xf32>
    %57 = vector.extract_strided_slice %17 {offsets = [0, 1], sizes = [128, 127], strides = [1, 1]} : vector<128x128xf32> to vector<128x127xf32>
    %58 = vector.extract_strided_slice %17 {offsets = [0, 0], sizes = [128, 1], strides = [1, 1]} : vector<128x128xf32> to vector<128x1xf32>
    %59 = tpu.concatenate %57, %58 in 1 : vector<128x127xf32>, vector<128x1xf32> -> vector<128x128xf32>
    %60 = vector.extract_strided_slice %17 {offsets = [0, 127], sizes = [128, 1], strides = [1, 1]} : vector<128x128xf32> to vector<128x1xf32>
    %61 = vector.extract_strided_slice %17 {offsets = [0, 0], sizes = [128, 127], strides = [1, 1]} : vector<128x128xf32> to vector<128x127xf32>
    %62 = tpu.concatenate %60, %61 in 1 : vector<128x1xf32>, vector<128x127xf32> -> vector<128x128xf32>
    %63 = vector.shape_cast %43 : vector<1x128xi1> to vector<1x128xi1>
    %64 = vector.broadcast %63 : vector<1x128xi1> to vector<128x128xi1>
    %65 = arith.select %64, %59, %62 : vector<128x128xi1>, vector<128x128xf32>
    %66 = arith.mulf %65, %23 : vector<128x128xf32>
    %67 = arith.addf %56, %66 : vector<128x128xf32>
    %68 = arith.truncf %55 : vector<128x128xf32> to vector<128x128xbf16>
    %c0_29 = arith.constant 0 : index
    %c0_30 = arith.constant 0 : index
    %c0_31 = arith.constant 0 : index
    %69 = vector.load %arg12[%c0_29, %c0_30, %c0_31] : memref<1x128x128xbf16, #tpu.memory_space<vmem>>, vector<1x128x128xbf16>
    %70 = vector.shape_cast %69 : vector<1x128x128xbf16> to vector<128x128xbf16>
    %71 = vector.shape_cast %68 : vector<128x128xbf16> to vector<1x128x128xbf16>
    tpu.vector_store %arg12[%c0_29, %c0_30, %c0_31], %71 {strides = array<i32>} : memref<1x128x128xbf16, #tpu.memory_space<vmem>>, vector<1x128x128xbf16>,
    %c0_32 = arith.constant 0 : index
    %c0_33 = arith.constant 0 : index
    %c0_34 = arith.constant 0 : index
    %72 = vector.load %arg13[%c0_32, %c0_33, %c0_34] : memref<1x128x128xf32, #tpu.memory_space<vmem>>, vector<1x128x128xf32>
    %73 = vector.shape_cast %72 : vector<1x128x128xf32> to vector<128x128xf32>
    %74 = vector.shape_cast %12 : vector<128x128xf32> to vector<1x128x128xf32>
    tpu.vector_store %arg13[%c0_32, %c0_33, %c0_34], %74 {strides = array<i32>} : memref<1x128x128xf32, #tpu.memory_space<vmem>>, vector<1x128x128xf32>,
    %75 = arith.truncf %67 : vector<128x128xf32> to vector<128x128xbf16>
    %c0_35 = arith.constant 0 : index
    %c0_36 = arith.constant 0 : index
    %c0_37 = arith.constant 0 : index
    %76 = vector.load %arg14[%c0_35, %c0_36, %c0_37] : memref<1x128x128xbf16, #tpu.memory_space<vmem>>, vector<1x128x128xbf16>
    %77 = vector.shape_cast %76 : vector<1x128x128xbf16> to vector<128x128xbf16>
    %78 = vector.shape_cast %75 : vector<128x128xbf16> to vector<1x128x128xbf16>
    tpu.vector_store %arg14[%c0_35, %c0_36, %c0_37], %78 {strides = array<i32>} : memref<1x128x128xbf16, #tpu.memory_space<vmem>>, vector<1x128x128xbf16>,
    %79 = arith.truncf %22 : vector<128x128xf32> to vector<128x128xbf16>
    %c0_38 = arith.constant 0 : index
    %c0_39 = arith.constant 0 : index
    %c0_40 = arith.constant 0 : index
    %80 = vector.load %arg15[%c0_38, %c0_39, %c0_40] : memref<1x128x128xbf16, #tpu.memory_space<vmem>>, vector<1x128x128xbf16>
    %81 = vector.shape_cast %80 : vector<1x128x128xbf16> to vector<128x128xbf16>
    %82 = vector.shape_cast %79 : vector<128x128xbf16> to vector<1x128x128xbf16>
    tpu.vector_store %arg15[%c0_38, %c0_39, %c0_40], %82 {strides = array<i32>} : memref<1x128x128xbf16, #tpu.memory_space<vmem>>, vector<1x128x128xbf16>,
    return
  }
  func.func @transform_0(%arg0: i32, %arg1: i32) -> (i32, i32, i32) {
    %c0_i32 = arith.constant 0 : i32
    %c0_i32_0 = arith.constant 0 : i32
    return %arg0, %arg1, %c0_i32 : i32, i32, i32
  }
  func.func @transform_1(%arg0: i32, %arg1: i32) -> (i32, i32, i32) {
    %c0_i32 = arith.constant 0 : i32
    %c0_i32_0 = arith.constant 0 : i32
    return %arg0, %arg1, %c0_i32 : i32, i32, i32
  }
  func.func @transform_2(%arg0: i32, %arg1: i32) -> (i32, i32, i32) {
    %c0_i32 = arith.constant 0 : i32
    %c0_i32_0 = arith.constant 0 : i32
    return %arg0, %arg1, %c0_i32 : i32, i32, i32
  }
  func.func @transform_3(%arg0: i32, %arg1: i32) -> (i32, i32) {
    %c0_i32 = arith.constant 0 : i32
    %c0_i32_0 = arith.constant 0 : i32
    %c0_i32_1 = arith.constant 0 : i32
    return %c0_i32, %c0_i32_0 : i32, i32
  }
  func.func @transform_4(%arg0: i32, %arg1: i32) -> (i32, i32) {
    %c0_i32 = arith.constant 0 : i32
    %c0_i32_0 = arith.constant 0 : i32
    %c0_i32_1 = arith.constant 0 : i32
    return %c0_i32, %c0_i32_0 : i32, i32
  }
  func.func @transform_5(%arg0: i32, %arg1: i32) -> (i32, i32) {
    %c0_i32 = arith.constant 0 : i32
    %c0_i32_0 = arith.constant 0 : i32
    %c0_i32_1 = arith.constant 0 : i32
    return %c0_i32, %c0_i32_0 : i32, i32
  }
  func.func @transform_6(%arg0: i32, %arg1: i32) -> (i32, i32) {
    %c0_i32 = arith.constant 0 : i32
    %c0_i32_0 = arith.constant 0 : i32
    %c0_i32_1 = arith.constant 0 : i32
    return %c0_i32, %c0_i32_0 : i32, i32
  }
  func.func @transform_7(%arg0: i32, %arg1: i32) -> (i32, i32) {
    %c0_i32 = arith.constant 0 : i32
    %c0_i32_0 = arith.constant 0 : i32
    %c0_i32_1 = arith.constant 0 : i32
    return %c0_i32, %c0_i32_0 : i32, i32
  }
  func.func @transform_8(%arg0: i32, %arg1: i32) -> (i32, i32) {
    %c0_i32 = arith.constant 0 : i32
    %c0_i32_0 = arith.constant 0 : i32
    return %arg1, %c0_i32 : i32, i32
  }
  func.func @transform_9(%arg0: i32, %arg1: i32) -> (i32, i32) {
    %c0_i32 = arith.constant 0 : i32
    %c0_i32_0 = arith.constant 0 : i32
    return %arg1, %c0_i32 : i32, i32
  }
  func.func @transform_10(%arg0: i32, %arg1: i32) -> (i32, i32, i32) {
    %c0_i32 = arith.constant 0 : i32
    %c0_i32_0 = arith.constant 0 : i32
    return %arg0, %arg1, %c0_i32 : i32, i32, i32
  }
  func.func @transform_11(%arg0: i32, %arg1: i32) -> (i32, i32, i32) {
    %c0_i32 = arith.constant 0 : i32
    %c0_i32_0 = arith.constant 0 : i32
    return %arg0, %arg1, %c0_i32 : i32, i32, i32
  }
  func.func @transform_12(%arg0: i32, %arg1: i32) -> (i32, i32, i32) {
    %c0_i32 = arith.constant 0 : i32
    %c0_i32_0 = arith.constant 0 : i32
    return %arg0, %arg1, %c0_i32 : i32, i32, i32
  }
  func.func @transform_13(%arg0: i32, %arg1: i32) -> (i32, i32, i32) {
    %c0_i32 = arith.constant 0 : i32
    %c0_i32_0 = arith.constant 0 : i32
    return %arg0, %arg1, %c0_i32 : i32, i32, i32
  }
}

</mosaic_0001>

<llo_original>
// kernel: tpu_custom_call.1
$region0: #{tpu_custom_call.1}
  #allocation0 [shape = 'u32[]', space=smem, size = 0x4, offset = 0x4, fixed_abs, tag = 'smem constant byte address 0x4 - core index']
  #allocation1 [shape = 'u32[144,128]{1,0:T(1,128)}', space=vmem, size = 0x12000, scoped, tag = 'internal scratch']
  %s0 = inlined_call_operand.hbm [shape: bf16[2,256,128], index: 0, kind: input, shape index: {}]
  %s1 = inlined_call_operand.hbm [shape: bf16[2,256,128], index: 1, kind: input, shape index: {}]
  %s2 = inlined_call_operand.hbm [shape: bf16[2,256,128], index: 2, kind: input, shape index: {}]
  %s3 = inlined_call_operand.hbm [shape: bf16[128,256], index: 3, kind: input, shape index: {}]
  %s4 = inlined_call_operand.vmem [shape: f32[1,256], index: 4, kind: input, shape index: {}]
  %s5 = inlined_call_operand.hbm [shape: bf16[128,128], index: 5, kind: input, shape index: {}]
  %s6 = inlined_call_operand.hbm [shape: bf16[128,128], index: 6, kind: input, shape index: {}]
  %s7 = inlined_call_operand.vmem [shape: f32[2,128], index: 7, kind: input, shape index: {}]
  %s8 = inlined_call_operand.hbm [shape: f32[256,128], index: 8, kind: input, shape index: {}]
  %s9 = inlined_call_operand.hbm [shape: f32[256,128], index: 9, kind: input, shape index: {}]
  %s10 = inlined_call_operand.hbm [shape: bf16[2,256,128], index: 10, kind: output, shape index: {0}]
  %s11 = inlined_call_operand.hbm [shape: f32[2,256,128], index: 11, kind: output, shape index: {1}]
  %s12 = inlined_call_operand.hbm [shape: bf16[2,256,128], index: 12, kind: output, shape index: {2}]
  %s13 = inlined_call_operand.hbm [shape: bf16[2,256,128], index: 13, kind: output, shape index: {3}]
  %14 = xla_tuple %s10, %s11, %s12, %s13
  %s15 = sld [smem:[#allocation0]]
  $region129: #{tpu_custom_call.1} parent=0
    _
  %s17 = ssub.s32 1, %s15
  %s18 = scalar_select 0, %s17, %s15
  $region1: #{tpu_custom_call.1} parent=0
    #allocation2 [shape = 'u8[65536]{0}', space=vmem, size = 0x10000, scoped, tag = 'input window, operand 0']
    #allocation3 [shape = 's32[2]{0}', space=sflag, size = 0x8, scoped, tag = 'scoped memory for tpu_custom_call.1']
    #allocation4 [shape = 's32[2]{0}', space=sflag, size = 0x8, scoped, tag = 'scoped memory for tpu_custom_call.1']
    #allocation5 [shape = 'u8[65536]{0}', space=vmem, size = 0x10000, scoped, tag = 'input window, operand 1']
    #allocation6 [shape = 's32[2]{0}', space=sflag, size = 0x8, scoped, tag = 'scoped memory for tpu_custom_call.1']
    #allocation7 [shape = 'u8[65536]{0}', space=vmem, size = 0x10000, scoped, tag = 'input window, operand 2']
    #allocation8 [shape = 'u8[65536]{0}', space=vmem, size = 0x10000, scoped, tag = 'input window, operand 3, single buffered']
    #allocation9 [shape = 's32[1]{0}', space=sflag, size = 0x4, scoped, tag = 'scoped memory for tpu_custom_call.1']
    #allocation10 [shape = 'u8[32768]{0}', space=vmem, size = 0x8000, scoped, tag = 'input window, operand 5, single buffered']
    #allocation11 [shape = 'u8[32768]{0}', space=vmem, size = 0x8000, scoped, tag = 'input window, operand 6, single buffered']
    #allocation12 [shape = 's32[1]{0}', space=sflag, size = 0x4, scoped, tag = 'scoped memory for tpu_custom_call.1']
    #allocation13 [shape = 'u8[131072]{0}', space=vmem, size = 0x20000, scoped, tag = 'input window, operand 8']
    #allocation14 [shape = 'u8[131072]{0}', space=vmem, size = 0x20000, scoped, tag = 'input window, operand 9']
    #allocation15 [shape = 'u8[65536]{0}', space=vmem, size = 0x10000, scoped, tag = 'output window, operand 0']
    #allocation16 [shape = 'u8[131072]{0}', space=vmem, size = 0x20000, scoped, tag = 'output window, operand 1']
    #allocation17 [shape = 's32[2]{0}', space=sflag, size = 0x8, scoped, tag = 'scoped memory for tpu_custom_call.1']
    #allocation18 [shape = 'u8[65536]{0}', space=vmem, size = 0x10000, scoped, tag = 'output window, operand 2']
    #allocation19 [shape = 'u8[65536]{0}', space=vmem, size = 0x10000, scoped, tag = 'output window, operand 3']
    #allocation20 [shape = 's32[2]{0}', space=sflag, size = 0x8, scoped, tag = 'scoped memory for tpu_custom_call.1']
    %19 = vsyncpa [#allocation3], 0
    %s20 = scalar_lea.sflag [#allocation3], 1
    %21 = vsyncpa %s20, 0
    %22 = vsyncpa [#allocation6], 0
    %s23 = scalar_lea.sflag [#allocation6], 1
    %24 = vsyncpa %s23, 0
    %25 = vsyncpa [#allocation9], 0
    %26 = vsyncpa [#allocation12], 0
    %27 = vsyncpa [#allocation4], 0
    %s28 = scalar_lea.sflag [#allocation4], 1
    %29 = vsyncpa %s28, 0
    %30 = vsyncpa [#allocation17], 0
    %s31 = scalar_lea.sflag [#allocation17], 1
    %32 = vsyncpa %s31, 0
    %33 = vsyncpa [#allocation20], 0
    %s34 = scalar_lea.sflag [#allocation20], 1
    %35 = vsyncpa %s34, 0
    loop: start=0, step=1, limit=6
    $region2: #{tpu_custom_call.1} parent=1 // loop_pre_header
      _
    $region3: #{tpu_custom_call.1} parent=1 // loop_header
      %s37 = sphi 0, %s41
      %p38 = scmp.ge.s32.totalorder %s37, 6
      %s44 = sphi 0, %s56
      %s45 = sphi 0, %s52
      %s46 = sphi 0, %s44
      %s47 = sphi 0, %s45
      %s48 = sphi 0, %s46
      %s49 = sphi 0, %s47
      %s61 = sphi 0, %s63
      %s64 = sphi 0, %s61
      %s65 = sphi 0, %s64
      %s81 = sphi 0, %s65
      %s89 = sphi 0, %s91
      %s92 = sphi 0, %s89
      %s93 = sphi 0, %s92
      %s109 = sphi 0, %s93
      %s117 = sphi 0, %s119
      %s120 = sphi 0, %s117
      %s121 = sphi 0, %s120
      %s137 = sphi 0, %s121
      %s141 = sphi 0, %s141
      %s143 = sphi 0, %s141
      %s144 = sphi 0, %s143
      %s158 = sphi 0, %s144
      %s162 = sphi 0, %s162
      %s164 = sphi 0, %s162
      %s165 = sphi 0, %s164
      %s179 = sphi 0, %s165
      %s183 = sphi 0, %s183
      %s185 = sphi 0, %s183
      %s186 = sphi 0, %s185
      %s200 = sphi 0, %s186
      %s204 = sphi 0, %s204
      %s206 = sphi 0, %s204
      %s207 = sphi 0, %s206
      %s221 = sphi 0, %s207
      %s225 = sphi 0, %s225
      %s227 = sphi 0, %s225
      %s228 = sphi 0, %s227
      %s242 = sphi 0, %s228
      %s248 = sphi 0, %s250
      %s251 = sphi 0, %s248
      %s252 = sphi 0, %s251
      %s268 = sphi 0, %s252
      %s274 = sphi 0, %s276
      %s277 = sphi 0, %s274
      %s278 = sphi 0, %s277
      %s294 = sphi 0, %s278
      %s302 = sphi 0, %s304
      %s305 = sphi 0, %s302
      %s306 = sphi 0, %s305
      %s322 = sphi 0, %s306
      %s330 = sphi 0, %s332
      %s333 = sphi 0, %s330
      %s334 = sphi 0, %s333
      %s350 = sphi 0, %s334
      %s358 = sphi 0, %s360
      %s361 = sphi 0, %s358
      %s362 = sphi 0, %s361
      %s378 = sphi 0, %s362
      %s386 = sphi 0, %s388
      %s389 = sphi 0, %s386
      %s390 = sphi 0, %s389
      %s406 = sphi 0, %s390
    $region4: #{tpu_custom_call.1} parent=1 // loop_header_branch
      %40 = sbr.rel (%p38) target = $region8
    $region5: #{tpu_custom_call.1} parent=1 // loop_body
      %s42 = ssub.s32 %s37, 1
      %s43 = ssub.s32 %s37, 2
      %s50 = sadd.s32 1, %s45
      %p51 = scmp.ge.s32.totalorder %s50, 2
      %s52 = scalar_select %p51, 0, %s50
      %s53 = sadd.s32 1, %s44
      %s54 = scalar_select %p51, %s53, %s44
      %p55 = scmp.ge.s32.totalorder %s54, 2
      %s56 = scalar_select %p55, 0, %s54
      %s57 = ssub.s32 %s44, %s56
      %s58 = ssub.s32 %s45, %s52
      %s59 = sor.u32 %s57, %s58
      %p60 = scmp.eq.s32.totalorder %s59, 0
      %s62 = sadd.s32 %s61, 1
      %s63 = scalar_select %p60, %s61, %s62
      %p66 = pneg %p60
      %p67 = scmp.eq.s32.totalorder %s37, 3
      %p68 = por %p66, %p67
      %p69 = scmp.ne.s32.totalorder %s61, %s64
      %p70 = scmp.eq.s32.totalorder %s37, 0
      %p71 = por %p69, %p70
      %p72 = scmp.ne.s32.totalorder %s61, %s64
      %p73 = scmp.eq.s32.totalorder %s42, 3
      %p74 = por %p72, %p73
      %p75 = scmp.ne.s32.totalorder %s64, %s65
      %p76 = scmp.eq.s32.totalorder %s42, 0
      %p77 = por %p75, %p76
      %p78 = scmp.ne.s32.totalorder %s64, %s65
      %p79 = scmp.eq.s32.totalorder %s43, 3
      %p80 = por %p78, %p79
      %p82 = scmp.ne.s32.totalorder %s65, %s81
      %p83 = scmp.eq.s32.totalorder %s43, 0
      %p84 = por %p82, %p83
      %s85 = ssub.s32 %s44, %s56
      %s86 = ssub.s32 %s45, %s52
      %s87 = sor.u32 %s85, %s86
      %p88 = scmp.eq.s32.totalorder %s87, 0
      %s90 = sadd.s32 %s89, 1
      %s91 = scalar_select %p88, %s89, %s90
      %p94 = pneg %p88
      %p95 = scmp.eq.s32.totalorder %s37, 3
      %p96 = por %p94, %p95
      %p97 = scmp.ne.s32.totalorder %s89, %s92
      %p98 = scmp.eq.s32.totalorder %s37, 0
      %p99 = por %p97, %p98
      %p100 = scmp.ne.s32.totalorder %s89, %s92
      %p101 = scmp.eq.s32.totalorder %s42, 3
      %p102 = por %p100, %p101
      %p103 = scmp.ne.s32.totalorder %s92, %s93
      %p104 = scmp.eq.s32.totalorder %s42, 0
      %p105 = por %p103, %p104
      %p106 = scmp.ne.s32.totalorder %s92, %s93
      %p107 = scmp.eq.s32.totalorder %s43, 3
      %p108 = por %p106, %p107
      %p110 = scmp.ne.s32.totalorder %s93, %s109
      %p111 = scmp.eq.s32.totalorder %s43, 0
      %p112 = por %p110, %p111
      %s113 = ssub.s32 %s44, %s56
      %s114 = ssub.s32 %s45, %s52
      %s115 = sor.u32 %s113, %s114
      %p116 = scmp.eq.s32.totalorder %s115, 0
      %s118 = sadd.s32 %s117, 1
      %s119 = scalar_select %p116, %s117, %s118
      %p122 = pneg %p116
      %p123 = scmp.eq.s32.totalorder %s37, 3
      %p124 = por %p122, %p123
      %p125 = scmp.ne.s32.totalorder %s117, %s120
      %p126 = scmp.eq.s32.totalorder %s37, 0
      %p127 = por %p125, %p126
      %p128 = scmp.ne.s32.totalorder %s117, %s120
      %p129 = scmp.eq.s32.totalorder %s42, 3
      %p130 = por %p128, %p129
      %p131 = scmp.ne.s32.totalorder %s120, %s121
      %p132 = scmp.eq.s32.totalorder %s42, 0
      %p133 = por %p131, %p132
      %p134 = scmp.ne.s32.totalorder %s120, %s121
      %p135 = scmp.eq.s32.totalorder %s43, 3
      %p136 = por %p134, %p135
      %p138 = scmp.ne.s32.totalorder %s121, %s137
      %p139 = scmp.eq.s32.totalorder %s43, 0
      %p140 = por %p138, %p139
      %s142 = sadd.s32 %s141, 1
      %p145 = scmp.eq.s32.totalorder %s37, 3
      %p146 = scmp.ne.s32.totalorder %s141, %s143
      %p147 = scmp.eq.s32.totalorder %s37, 0
      %p148 = por %p146, %p147
      %p149 = scmp.ne.s32.totalorder %s141, %s143
      %p150 = scmp.eq.s32.totalorder %s42, 3
      %p151 = por %p149, %p150
      %p152 = scmp.ne.s32.totalorder %s143, %s144
      %p153 = scmp.eq.s32.totalorder %s42, 0
      %p154 = por %p152, %p153
      %p155 = scmp.ne.s32.totalorder %s143, %s144
      %p156 = scmp.eq.s32.totalorder %s43, 3
      %p157 = por %p155, %p156
      %p159 = scmp.ne.s32.totalorder %s144, %s158
      %p160 = scmp.eq.s32.totalorder %s43, 0
      %p161 = por %p159, %p160
      %s163 = sadd.s32 %s162, 1
      %p166 = scmp.eq.s32.totalorder %s37, 3
      %p167 = scmp.ne.s32.totalorder %s162, %s164
      %p168 = scmp.eq.s32.totalorder %s37, 0
      %p169 = por %p167, %p168
      %p170 = scmp.ne.s32.totalorder %s162, %s164
      %p171 = scmp.eq.s32.totalorder %s42, 3
      %p172 = por %p170, %p171
      %p173 = scmp.ne.s32.totalorder %s164, %s165
      %p174 = scmp.eq.s32.totalorder %s42, 0
      %p175 = por %p173, %p174
      %p176 = scmp.ne.s32.totalorder %s164, %s165
      %p177 = scmp.eq.s32.totalorder %s43, 3
      %p178 = por %p176, %p177
      %p180 = scmp.ne.s32.totalorder %s165, %s179
      %p181 = scmp.eq.s32.totalorder %s43, 0
      %p182 = por %p180, %p181
      %s184 = sadd.s32 %s183, 1
      %p187 = scmp.eq.s32.totalorder %s37, 3
      %p188 = scmp.ne.s32.totalorder %s183, %s185
      %p189 = scmp.eq.s32.totalorder %s37, 0
      %p190 = por %p188, %p189
      %p191 = scmp.ne.s32.totalorder %s183, %s185
      %p192 = scmp.eq.s32.totalorder %s42, 3
      %p193 = por %p191, %p192
      %p194 = scmp.ne.s32.totalorder %s185, %s186
      %p195 = scmp.eq.s32.totalorder %s42, 0
      %p196 = por %p194, %p195
      %p197 = scmp.ne.s32.totalorder %s185, %s186
      %p198 = scmp.eq.s32.totalorder %s43, 3
      %p199 = por %p197, %p198
      %p201 = scmp.ne.s32.totalorder %s186, %s200
      %p202 = scmp.eq.s32.totalorder %s43, 0
      %p203 = por %p201, %p202
      %s205 = sadd.s32 %s204, 1
      %p208 = scmp.eq.s32.totalorder %s37, 3
      %p209 = scmp.ne.s32.totalorder %s204, %s206
      %p210 = scmp.eq.s32.totalorder %s37, 0
      %p211 = por %p209, %p210
      %p212 = scmp.ne.s32.totalorder %s204, %s206
      %p213 = scmp.eq.s32.totalorder %s42, 3
      %p214 = por %p212, %p213
      %p215 = scmp.ne.s32.totalorder %s206, %s207
      %p216 = scmp.eq.s32.totalorder %s42, 0
      %p217 = por %p215, %p216
      %p218 = scmp.ne.s32.totalorder %s206, %s207
      %p219 = scmp.eq.s32.totalorder %s43, 3
      %p220 = por %p218, %p219
      %p222 = scmp.ne.s32.totalorder %s207, %s221
      %p223 = scmp.eq.s32.totalorder %s43, 0
      %p224 = por %p222, %p223
      %s226 = sadd.s32 %s225, 1
      %p229 = scmp.eq.s32.totalorder %s37, 3
      %p230 = scmp.ne.s32.totalorder %s225, %s227
      %p231 = scmp.eq.s32.totalorder %s37, 0
      %p232 = por %p230, %p231
      %p233 = scmp.ne.s32.totalorder %s225, %s227
      %p234 = scmp.eq.s32.totalorder %s42, 3
      %p235 = por %p233, %p234
      %p236 = scmp.ne.s32.totalorder %s227, %s228
      %p237 = scmp.eq.s32.totalorder %s42, 0
      %p238 = por %p236, %p237
      %p239 = scmp.ne.s32.totalorder %s227, %s228
      %p240 = scmp.eq.s32.totalorder %s43, 3
      %p241 = por %p239, %p240
      %p243 = scmp.ne.s32.totalorder %s228, %s242
      %p244 = scmp.eq.s32.totalorder %s43, 0
      %p245 = por %p243, %p244
      %s246 = ssub.s32 %s45, %s52
      %p247 = scmp.eq.s32.totalorder %s246, 0
      %s249 = sadd.s32 %s248, 1
      %s250 = scalar_select %p247, %s248, %s249
      %p253 = pneg %p247
      %p254 = scmp.eq.s32.totalorder %s37, 3
      %p255 = por %p253, %p254
      %p256 = scmp.ne.s32.totalorder %s248, %s251
      %p257 = scmp.eq.s32.totalorder %s37, 0
      %p258 = por %p256, %p257
      %p259 = scmp.ne.s32.totalorder %s248, %s251
      %p260 = scmp.eq.s32.totalorder %s42, 3
      %p261 = por %p259, %p260
      %p262 = scmp.ne.s32.totalorder %s251, %s252
      %p263 = scmp.eq.s32.totalorder %s42, 0
      %p264 = por %p262, %p263
      %p265 = scmp.ne.s32.totalorder %s251, %s252
      %p266 = scmp.eq.s32.totalorder %s43, 3
      %p267 = por %p265, %p266
      %p269 = scmp.ne.s32.totalorder %s252, %s268
      %p270 = scmp.eq.s32.totalorder %s43, 0
      %p271 = por %p269, %p270
      %s272 = ssub.s32 %s45, %s52
      %p273 = scmp.eq.s32.totalorder %s272, 0
      %s275 = sadd.s32 %s274, 1
      %s276 = scalar_select %p273, %s274, %s275
      %p279 = pneg %p273
      %p280 = scmp.eq.s32.totalorder %s37, 3
      %p281 = por %p279, %p280
      %p282 = scmp.ne.s32.totalorder %s274, %s277
      %p283 = scmp.eq.s32.totalorder %s37, 0
      %p284 = por %p282, %p283
      %p285 = scmp.ne.s32.totalorder %s274, %s277
      %p286 = scmp.eq.s32.totalorder %s42, 3
      %p287 = por %p285, %p286
      %p288 = scmp.ne.s32.totalorder %s277, %s278
      %p289 = scmp.eq.s32.totalorder %s42, 0
      %p290 = por %p288, %p289
      %p291 = scmp.ne.s32.totalorder %s277, %s278
      %p292 = scmp.eq.s32.totalorder %s43, 3
      %p293 = por %p291, %p292
      %p295 = scmp.ne.s32.totalorder %s278, %s294
      %p296 = scmp.eq.s32.totalorder %s43, 0
      %p297 = por %p295, %p296
      %s298 = ssub.s32 %s44, %s56
      %s299 = ssub.s32 %s45, %s52
      %s300 = sor.u32 %s298, %s299
      %p301 = scmp.eq.s32.totalorder %s300, 0
      %s303 = sadd.s32 %s302, 1
      %s304 = scalar_select %p301, %s302, %s303
      %p307 = pneg %p301
      %p308 = scmp.eq.s32.totalorder %s37, 3
      %p309 = por %p307, %p308
      %p310 = scmp.ne.s32.totalorder %s302, %s305
      %p311 = scmp.eq.s32.totalorder %s37, 0
      %p312 = por %p310, %p311
      %p313 = scmp.ne.s32.totalorder %s302, %s305
      %p314 = scmp.eq.s32.totalorder %s42, 3
      %p315 = por %p313, %p314
      %p316 = scmp.ne.s32.totalorder %s305, %s306
      %p317 = scmp.eq.s32.totalorder %s42, 0
      %p318 = por %p316, %p317
      %p319 = scmp.ne.s32.totalorder %s305, %s306
      %p320 = scmp.eq.s32.totalorder %s43, 3
      %p321 = por %p319, %p320
      %p323 = scmp.ne.s32.totalorder %s306, %s322
      %p324 = scmp.eq.s32.totalorder %s43, 0
      %p325 = por %p323, %p324
      %s326 = ssub.s32 %s44, %s56
      %s327 = ssub.s32 %s45, %s52
      %s328 = sor.u32 %s326, %s327
      %p329 = scmp.eq.s32.totalorder %s328, 0
      %s331 = sadd.s32 %s330, 1
      %s332 = scalar_select %p329, %s330, %s331
      %p335 = pneg %p329
      %p336 = scmp.eq.s32.totalorder %s37, 3
      %p337 = por %p335, %p336
      %p338 = scmp.ne.s32.totalorder %s330, %s333
      %p339 = scmp.eq.s32.totalorder %s37, 0
      %p340 = por %p338, %p339
      %p341 = scmp.ne.s32.totalorder %s330, %s333
      %p342 = scmp.eq.s32.totalorder %s42, 3
      %p343 = por %p341, %p342
      %p344 = scmp.ne.s32.totalorder %s333, %s334
      %p345 = scmp.eq.s32.totalorder %s42, 0
      %p346 = por %p344, %p345
      %p347 = scmp.ne.s32.totalorder %s333, %s334
      %p348 = scmp.eq.s32.totalorder %s43, 3
      %p349 = por %p347, %p348
      %p351 = scmp.ne.s32.totalorder %s334, %s350
      %p352 = scmp.eq.s32.totalorder %s43, 0
      %p353 = por %p351, %p352
      %s354 = ssub.s32 %s44, %s56
      %s355 = ssub.s32 %s45, %s52
      %s356 = sor.u32 %s354, %s355
      %p357 = scmp.eq.s32.totalorder %s356, 0
      %s359 = sadd.s32 %s358, 1
      %s360 = scalar_select %p357, %s358, %s359
      %p363 = pneg %p357
      %p364 = scmp.eq.s32.totalorder %s37, 3
      %p365 = por %p363, %p364
      %p366 = scmp.ne.s32.totalorder %s358, %s361
      %p367 = scmp.eq.s32.totalorder %s37, 0
      %p368 = por %p366, %p367
      %p369 = scmp.ne.s32.totalorder %s358, %s361
      %p370 = scmp.eq.s32.totalorder %s42, 3
      %p371 = por %p369, %p370
      %p372 = scmp.ne.s32.totalorder %s361, %s362
      %p373 = scmp.eq.s32.totalorder %s42, 0
      %p374 = por %p372, %p373
      %p375 = scmp.ne.s32.totalorder %s361, %s362
      %p376 = scmp.eq.s32.totalorder %s43, 3
      %p377 = por %p375, %p376
      %p379 = scmp.ne.s32.totalorder %s362, %s378
      %p380 = scmp.eq.s32.totalorder %s43, 0
      %p381 = por %p379, %p380
      %s382 = ssub.s32 %s44, %s56
      %s383 = ssub.s32 %s45, %s52
      %s384 = sor.u32 %s382, %s383
      %p385 = scmp.eq.s32.totalorder %s384, 0
      %s387 = sadd.s32 %s386, 1
      %s388 = scalar_select %p385, %s386, %s387
      %p391 = pneg %p385
      %p392 = scmp.eq.s32.totalorder %s37, 3
      %p393 = por %p391, %p392
      %p394 = scmp.ne.s32.totalorder %s386, %s389
      %p395 = scmp.eq.s32.totalorder %s37, 0
      %p396 = por %p394, %p395
      %p397 = scmp.ne.s32.totalorder %s386, %s389
      %p398 = scmp.eq.s32.totalorder %s42, 3
      %p399 = por %p397, %p398
      %p400 = scmp.ne.s32.totalorder %s389, %s390
      %p401 = scmp.eq.s32.totalorder %s42, 0
      %p402 = por %p400, %p401
      %p403 = scmp.ne.s32.totalorder %s389, %s390
      %p404 = scmp.eq.s32.totalorder %s43, 3
      %p405 = por %p403, %p404
      %p407 = scmp.ne.s32.totalorder %s390, %s406
      %p408 = scmp.eq.s32.totalorder %s43, 0
      %p409 = por %p407, %p408
      %p410 = scmp.le.s32.totalorder 1, %s37
      %p411 = scmp.lt.s32.totalorder %s37, 5
      %p412 = pnand %p410, %p411
      %p413 = pneg %p412
      // Predicated region
      $region9: #{tpu_custom_call.1} parent=5 // pred_check
        _
      $region10: #{tpu_custom_call.1} parent=5 // pred_check_branch
        %415 = sbr.rel (%p412) target = $region12
      $region11: #{tpu_custom_call.1} parent=5 // pred_region
        %s416 = ssub.s32 %s37, 1
        // Predicated region
        $region13: #{tpu_custom_call.1} parent=11 // pred_check
          %p417 = pneg %p154
        $region14: #{tpu_custom_call.1} parent=11 // pred_check_branch
          %419 = sbr.rel (%p417) target = $region16
        $region15: #{tpu_custom_call.1} parent=11 // pred_region
          %s421 = ssub.s32 2048, 2048
          %422 = vsyncadd [#allocation9], %s421
          %s423 = sshll.u32 [#allocation8], 4
          %s424 = int_to_ptr.vmem [resolvable:$true] %s423
          %429 = dma.hbm_to_vmem [thread:$0]  %s3, 2048, %s424, [#allocation9], 128, 128, 8
        $region16: #{tpu_custom_call.1} parent=11 // pred_fallthru
          _
        // Predicated region
        $region17: #{tpu_custom_call.1} parent=11 // pred_check
          %p430 = pneg %p175
        $region18: #{tpu_custom_call.1} parent=11 // pred_check_branch
          %432 = sbr.rel (%p430) target = $region20
        $region19: #{tpu_custom_call.1} parent=11 // pred_region
          _
        $region20: #{tpu_custom_call.1} parent=11 // pred_fallthru
          _
        // Predicated region
        $region21: #{tpu_custom_call.1} parent=11 // pred_check
          %p433 = pneg %p196
        $region22: #{tpu_custom_call.1} parent=11 // pred_check_branch
          %435 = sbr.rel (%p433) target = $region24
        $region23: #{tpu_custom_call.1} parent=11 // pred_region
          %s437 = ssub.s32 1024, 1024
          %438 = vsyncadd [#allocation9], %s437
          %s439 = sshll.u32 [#allocation10], 4
          %s440 = int_to_ptr.vmem [resolvable:$true] %s439
          %445 = dma.hbm_to_vmem [thread:$0]  %s5, 1024, %s440, [#allocation9], 64, 64, 4
        $region24: #{tpu_custom_call.1} parent=11 // pred_fallthru
          _
        // Predicated region
        $region25: #{tpu_custom_call.1} parent=11 // pred_check
          %p446 = pneg %p217
        $region26: #{tpu_custom_call.1} parent=11 // pred_check_branch
          %448 = sbr.rel (%p446) target = $region28
        $region27: #{tpu_custom_call.1} parent=11 // pred_region
          %s450 = ssub.s32 1024, 1024
          %451 = vsyncadd [#allocation12], %s450
          %s452 = sshll.u32 [#allocation11], 4
          %s453 = int_to_ptr.vmem [resolvable:$true] %s452
          %458 = dma.hbm_to_vmem [thread:$0]  %s6, 1024, %s453, [#allocation12], 64, 64, 4
        $region28: #{tpu_custom_call.1} parent=11 // pred_fallthru
          _
        // Predicated region
        $region29: #{tpu_custom_call.1} parent=11 // pred_check
          %p459 = pneg %p238
        $region30: #{tpu_custom_call.1} parent=11 // pred_check_branch
          %461 = sbr.rel (%p459) target = $region32
        $region31: #{tpu_custom_call.1} parent=11 // pred_region
          _
        $region32: #{tpu_custom_call.1} parent=11 // pred_fallthru
          _
      $region12: #{tpu_custom_call.1} parent=5 // pred_fallthru
        _
      %p462 = scmp.lt.s32.totalorder %s37, 4
      // Predicated region
      $region33: #{tpu_custom_call.1} parent=5 // pred_check
        %p463 = pneg %p462
      $region34: #{tpu_custom_call.1} parent=5 // pred_check_branch
        %465 = sbr.rel (%p463) target = $region36
      $region35: #{tpu_custom_call.1} parent=5 // pred_region
        // Predicated region
        $region37: #{tpu_custom_call.1} parent=35 // pred_check
          %p466 = pneg %p71
        $region38: #{tpu_custom_call.1} parent=35 // pred_check_branch
          %468 = sbr.rel (%p466) target = $region40
        $region39: #{tpu_custom_call.1} parent=35 // pred_region
          %s469 = sand.u32 %s37, 1
          %s470 = scalar_lea.sflag [#allocation3], %s469
          %s471 = sand.u32 %s61, 1
          %s472 = smul.addr %s471, 64
          %s473 = scalar_lea.vmem [#allocation2], %s472
          %s474 = smul.u32 16, %s45
          %s476 = ssub.s32 1024, 1024
          %477 = vsyncadd %s470, %s476
          %s478 = smul.addr %s44, 32
          %s479 = sadd.s32 %s474, %s478
          %s480 = smul.addr %s479, 64
          %s481 = scalar_lea.hbm %s0, %s480
          %s482 = sshll.u32 %s473, 4
          %s483 = int_to_ptr.vmem [resolvable:$true] %s482
          %488 = dma.hbm_to_vmem [thread:$0]  %s481, 1024, %s483, %s470, 64, 64, 4
        $region40: #{tpu_custom_call.1} parent=35 // pred_fallthru
          _
        // Predicated region
        $region41: #{tpu_custom_call.1} parent=35 // pred_check
          %p489 = pneg %p99
        $region42: #{tpu_custom_call.1} parent=35 // pred_check_branch
          %491 = sbr.rel (%p489) target = $region44
        $region43: #{tpu_custom_call.1} parent=35 // pred_region
          %s492 = sand.u32 %s37, 1
          %s493 = scalar_lea.sflag [#allocation6], %s492
          %s494 = sand.u32 %s89, 1
          %s495 = smul.addr %s494, 64
          %s496 = scalar_lea.vmem [#allocation5], %s495
          %s497 = smul.u32 16, %s45
          %s499 = ssub.s32 1024, 1024
          %500 = vsyncadd %s493, %s499
          %s501 = smul.addr %s44, 32
          %s502 = sadd.s32 %s497, %s501
          %s503 = smul.addr %s502, 64
          %s504 = scalar_lea.hbm %s1, %s503
          %s505 = sshll.u32 %s496, 4
          %s506 = int_to_ptr.vmem [resolvable:$true] %s505
          %511 = dma.hbm_to_vmem [thread:$0]  %s504, 1024, %s506, %s493, 64, 64, 4
        $region44: #{tpu_custom_call.1} parent=35 // pred_fallthru
          _
        // Predicated region
        $region45: #{tpu_custom_call.1} parent=35 // pred_check
          %p512 = pneg %p127
        $region46: #{tpu_custom_call.1} parent=35 // pred_check_branch
          %514 = sbr.rel (%p512) target = $region48
        $region47: #{tpu_custom_call.1} parent=35 // pred_region
          %s515 = sand.u32 %s37, 1
          %s516 = scalar_lea.sflag [#allocation6], %s515
          %s517 = sand.u32 %s117, 1
          %s518 = smul.addr %s517, 64
          %s519 = scalar_lea.vmem [#allocation7], %s518
          %s520 = smul.u32 16, %s45
          %s522 = ssub.s32 1024, 1024
          %523 = vsyncadd %s516, %s522
          %s524 = smul.addr %s44, 32
          %s525 = sadd.s32 %s520, %s524
          %s526 = smul.addr %s525, 64
          %s527 = scalar_lea.hbm %s2, %s526
          %s528 = sshll.u32 %s519, 4
          %s529 = int_to_ptr.vmem [resolvable:$true] %s528
          %534 = dma.hbm_to_vmem [thread:$0]  %s527, 1024, %s529, %s516, 64, 64, 4
        $region48: #{tpu_custom_call.1} parent=35 // pred_fallthru
          _
        // Predicated region
        $region49: #{tpu_custom_call.1} parent=35 // pred_check
          %p535 = pneg %p258
        $region50: #{tpu_custom_call.1} parent=35 // pred_check_branch
          %537 = sbr.rel (%p535) target = $region52
        $region51: #{tpu_custom_call.1} parent=35 // pred_region
          %s538 = sand.u32 %s37, 1
          %s539 = scalar_lea.sflag [#allocation3], %s538
          %s540 = sand.u32 %s248, 1
          %s541 = smul.addr %s540, 128
          %s542 = scalar_lea.vmem [#allocation13], %s541
          %s543 = smul.u32 16, %s45
          %s545 = ssub.s32 2048, 2048
          %546 = vsyncadd %s539, %s545
          %s547 = smul.addr %s543, 128
          %s548 = scalar_lea.hbm %s8, %s547
          %s549 = sshll.u32 %s542, 4
          %s550 = int_to_ptr.vmem [resolvable:$true] %s549
          %555 = dma.hbm_to_vmem [thread:$0]  %s548, 2048, %s550, %s539, 128, 128, 8
        $region52: #{tpu_custom_call.1} parent=35 // pred_fallthru
          _
        // Predicated region
        $region53: #{tpu_custom_call.1} parent=35 // pred_check
          %p556 = pneg %p284
        $region54: #{tpu_custom_call.1} parent=35 // pred_check_branch
          %558 = sbr.rel (%p556) target = $region56
        $region55: #{tpu_custom_call.1} parent=35 // pred_region
          %s559 = sand.u32 %s37, 1
          %s560 = scalar_lea.sflag [#allocation6], %s559
          %s561 = sand.u32 %s274, 1
          %s562 = smul.addr %s561, 128
          %s563 = scalar_lea.vmem [#allocation14], %s562
          %s564 = smul.u32 16, %s45
          %s566 = ssub.s32 2048, 2048
          %567 = vsyncadd %s560, %s566
          %s568 = smul.addr %s564, 128
          %s569 = scalar_lea.hbm %s9, %s568
          %s570 = sshll.u32 %s563, 4
          %s571 = int_to_ptr.vmem [resolvable:$true] %s570
          %576 = dma.hbm_to_vmem [thread:$0]  %s569, 2048, %s571, %s560, 128, 128, 8
        $region56: #{tpu_custom_call.1} parent=35 // pred_fallthru
          _
      $region36: #{tpu_custom_call.1} parent=5 // pred_fallthru
        _
      %p577 = scmp.le.s32.totalorder 1, %s37
      %p578 = scmp.lt.s32.totalorder %s37, 5
      %p579 = pnand %p577, %p578
      %p580 = pneg %p579
      // Predicated region
      $region57: #{tpu_custom_call.1} parent=5 // pred_check
        _
      $region58: #{tpu_custom_call.1} parent=5 // pred_check_branch
        %582 = sbr.rel (%p579) target = $region60
      $region59: #{tpu_custom_call.1} parent=5 // pred_region
        %s583 = ssub.s32 %s37, 1
        %s584 = sand.u32 %s42, 1
        %s585 = scalar_lea.sflag [#allocation3], %s584
        %s586 = sand.u32 %s64, 1
        %s587 = smul.addr %s586, 64
        %s588 = scalar_lea.vmem [#allocation2], %s587
        // Predicated region
        $region61: #{tpu_custom_call.1} parent=59 // pred_check
          %p589 = pneg %p77
        $region62: #{tpu_custom_call.1} parent=59 // pred_check_branch
          %591 = sbr.rel (%p589) target = $region64
        $region63: #{tpu_custom_call.1} parent=59 // pred_region
          %592 = dma.done %s585, 1024
        $region64: #{tpu_custom_call.1} parent=59 // pred_fallthru
          _
        %s593 = sand.u32 %s42, 1
        %s594 = scalar_lea.sflag [#allocation6], %s593
        %s595 = sand.u32 %s92, 1
        %s596 = smul.addr %s595, 64
        %s597 = scalar_lea.vmem [#allocation5], %s596
        // Predicated region
        $region65: #{tpu_custom_call.1} parent=59 // pred_check
          %p598 = pneg %p105
        $region66: #{tpu_custom_call.1} parent=59 // pred_check_branch
          %600 = sbr.rel (%p598) target = $region68
        $region67: #{tpu_custom_call.1} parent=59 // pred_region
          %601 = dma.done %s594, 1024
        $region68: #{tpu_custom_call.1} parent=59 // pred_fallthru
          _
        %s602 = sand.u32 %s42, 1
        %s603 = scalar_lea.sflag [#allocation6], %s602
        %s604 = sand.u32 %s120, 1
        %s605 = smul.addr %s604, 64
        %s606 = scalar_lea.vmem [#allocation7], %s605
        // Predicated region
        $region69: #{tpu_custom_call.1} parent=59 // pred_check
          %p607 = pneg %p133
        $region70: #{tpu_custom_call.1} parent=59 // pred_check_branch
          %609 = sbr.rel (%p607) target = $region72
        $region71: #{tpu_custom_call.1} parent=59 // pred_region
          %610 = dma.done %s603, 1024
        $region72: #{tpu_custom_call.1} parent=59 // pred_fallthru
          _
        // Predicated region
        $region73: #{tpu_custom_call.1} parent=59 // pred_check
          %p611 = pneg %p154
        $region74: #{tpu_custom_call.1} parent=59 // pred_check_branch
          %613 = sbr.rel (%p611) target = $region76
        $region75: #{tpu_custom_call.1} parent=59 // pred_region
          %614 = dma.done [#allocation9], 2048
        $region76: #{tpu_custom_call.1} parent=59 // pred_fallthru
          _
        // Predicated region
        $region77: #{tpu_custom_call.1} parent=59 // pred_check
          %p615 = pneg %p196
        $region78: #{tpu_custom_call.1} parent=59 // pred_check_branch
          %617 = sbr.rel (%p615) target = $region80
        $region79: #{tpu_custom_call.1} parent=59 // pred_region
          %618 = dma.done [#allocation9], 1024
        $region80: #{tpu_custom_call.1} parent=59 // pred_fallthru
          _
        // Predicated region
        $region81: #{tpu_custom_call.1} parent=59 // pred_check
          %p619 = pneg %p217
        $region82: #{tpu_custom_call.1} parent=59 // pred_check_branch
          %621 = sbr.rel (%p619) target = $region84
        $region83: #{tpu_custom_call.1} parent=59 // pred_region
          %622 = dma.done [#allocation12], 1024
        $region84: #{tpu_custom_call.1} parent=59 // pred_fallthru
          _
        %s623 = sand.u32 %s42, 1
        %s624 = scalar_lea.sflag [#allocation3], %s623
        %s625 = sand.u32 %s251, 1
        %s626 = smul.addr %s625, 128
        %s627 = scalar_lea.vmem [#allocation13], %s626
        // Predicated region
        $region85: #{tpu_custom_call.1} parent=59 // pred_check
          %p628 = pneg %p264
        $region86: #{tpu_custom_call.1} parent=59 // pred_check_branch
          %630 = sbr.rel (%p628) target = $region88
        $region87: #{tpu_custom_call.1} parent=59 // pred_region
          %631 = dma.done %s624, 2048
        $region88: #{tpu_custom_call.1} parent=59 // pred_fallthru
          _
        %s632 = sand.u32 %s42, 1
        %s633 = scalar_lea.sflag [#allocation6], %s632
        %s634 = sand.u32 %s277, 1
        %s635 = smul.addr %s634, 128
        %s636 = scalar_lea.vmem [#allocation14], %s635
        // Predicated region
        $region89: #{tpu_custom_call.1} parent=59 // pred_check
          %p637 = pneg %p290
        $region90: #{tpu_custom_call.1} parent=59 // pred_check_branch
          %639 = sbr.rel (%p637) target = $region92
        $region91: #{tpu_custom_call.1} parent=59 // pred_region
          %640 = dma.done %s633, 2048
        $region92: #{tpu_custom_call.1} parent=59 // pred_fallthru
          _
        %s641 = sand.u32 %s42, 1
        %s642 = scalar_lea.sflag [#allocation3], %s641
        %s643 = sand.u32 %s64, 1
        %s644 = smul.addr %s643, 64
        %s645 = scalar_lea.vmem [#allocation2], %s644
        %p646 = pneg %p77
        %p647 = pneg %p74
        %s648 = sand.u32 %s42, 1
        %s649 = scalar_lea.sflag [#allocation6], %s648
        %s650 = sand.u32 %s92, 1
        %s651 = smul.addr %s650, 64
        %s652 = scalar_lea.vmem [#allocation5], %s651
        %p653 = pneg %p105
        %p654 = pneg %p102
        %s655 = sand.u32 %s42, 1
        %s656 = scalar_lea.sflag [#allocation6], %s655
        %s657 = sand.u32 %s120, 1
        %s658 = smul.addr %s657, 64
        %s659 = scalar_lea.vmem [#allocation7], %s658
        %p660 = pneg %p133
        %p661 = pneg %p130
        %p662 = pneg %p154
        %p663 = pneg %p151
        %p664 = pneg %p175
        %p665 = pneg %p172
        %p666 = pneg %p196
        %p667 = pneg %p193
        %p668 = pneg %p217
        %p669 = pneg %p214
        %p670 = pneg %p238
        %p671 = pneg %p235
        %s672 = sand.u32 %s42, 1
        %s673 = scalar_lea.sflag [#allocation3], %s672
        %s674 = sand.u32 %s251, 1
        %s675 = smul.addr %s674, 128
        %s676 = scalar_lea.vmem [#allocation13], %s675
        %p677 = pneg %p264
        %p678 = pneg %p261
        %s679 = sand.u32 %s42, 1
        %s680 = scalar_lea.sflag [#allocation6], %s679
        %s681 = sand.u32 %s277, 1
        %s682 = smul.addr %s681, 128
        %s683 = scalar_lea.vmem [#allocation14], %s682
        %p684 = pneg %p290
        %p685 = pneg %p287
        %p686 = pneg %p318
        %p687 = pneg %p315
        %s688 = sand.u32 %s305, 1
        %s689 = scalar_lea.sflag [#allocation4], %s688
        %s690 = sand.u32 %s305, 1
        %s691 = smul.addr %s690, 64
        %s692 = scalar_lea.vmem [#allocation15], %s691
        %p693 = pneg %p346
        %p694 = pneg %p343
        %s695 = sand.u32 %s42, 1
        %s696 = scalar_lea.sflag [#allocation17], %s695
        %s697 = sand.u32 %s333, 1
        %s698 = smul.addr %s697, 128
        %s699 = scalar_lea.vmem [#allocation16], %s698
        %p700 = pneg %p374
        %p701 = pneg %p371
        %s702 = sand.u32 %s42, 1
        %s703 = scalar_lea.sflag [#allocation17], %s702
        %s704 = sand.u32 %s361, 1
        %s705 = smul.addr %s704, 64
        %s706 = scalar_lea.vmem [#allocation18], %s705
        %p707 = pneg %p402
        %p708 = pneg %p399
        %s709 = sand.u32 %s389, 1
        %s710 = scalar_lea.sflag [#allocation20], %s709
        %s711 = sand.u32 %s389, 1
        %s712 = smul.addr %s711, 64
        %s713 = scalar_lea.vmem [#allocation19], %s712
        %s714 = smul.u32 16, %s47
        %s715 = smul.u32 16, %s47
        %s716 = smul.u32 16, %s47
        %s717 = smul.u32 16, %s47
        %s718 = smul.u32 16, %s47
        %s719 = smul.u32 16, %s47
        %s720 = smul.u32 16, %s47
        %s721 = smul.u32 16, %s47
        %s722 = smul.u32 16, %s47
        %v724 = vld [vmem:[%s588] sm:$0xf]
        %v725 = vld [vmem:[%s588 + $0x4] sm:$0xf]
        %v726 = vld [vmem:[%s588 + $0x8] sm:$0xf]
        %v727 = vld [vmem:[%s588 + $0xc] sm:$0xf]
        %v728 = vld [vmem:[%s588 + $0x10] sm:$0xf]
        %v729 = vld [vmem:[%s588 + $0x14] sm:$0xf]
        %v730 = vld [vmem:[%s588 + $0x18] sm:$0xf]
        %v731 = vld [vmem:[%s588 + $0x1c] sm:$0xf]
        %v732 = vld [vmem:[%s588 + $0x20] sm:$0xf]
        %v733 = vld [vmem:[%s588 + $0x24] sm:$0xf]
        %v734 = vld [vmem:[%s588 + $0x28] sm:$0xf]
        %v735 = vld [vmem:[%s588 + $0x2c] sm:$0xf]
        %v736 = vld [vmem:[%s588 + $0x30] sm:$0xf]
        %v737 = vld [vmem:[%s588 + $0x34] sm:$0xf]
        %v738 = vld [vmem:[%s588 + $0x38] sm:$0xf]
        %v739 = vld [vmem:[%s588 + $0x3c] sm:$0xf]
        %v740 = vld [vmem:[%s597] sm:$0xf]
        %v741 = vld [vmem:[%s597 + $0x4] sm:$0xf]
        %v742 = vld [vmem:[%s597 + $0x8] sm:$0xf]
        %v743 = vld [vmem:[%s597 + $0xc] sm:$0xf]
        %v744 = vld [vmem:[%s597 + $0x10] sm:$0xf]
        %v745 = vld [vmem:[%s597 + $0x14] sm:$0xf]
        %v746 = vld [vmem:[%s597 + $0x18] sm:$0xf]
        %v747 = vld [vmem:[%s597 + $0x1c] sm:$0xf]
        %v748 = vld [vmem:[%s597 + $0x20] sm:$0xf]
        %v749 = vld [vmem:[%s597 + $0x24] sm:$0xf]
        %v750 = vld [vmem:[%s597 + $0x28] sm:$0xf]
        %v751 = vld [vmem:[%s597 + $0x2c] sm:$0xf]
        %v752 = vld [vmem:[%s597 + $0x30] sm:$0xf]
        %v753 = vld [vmem:[%s597 + $0x34] sm:$0xf]
        %v754 = vld [vmem:[%s597 + $0x38] sm:$0xf]
        %v755 = vld [vmem:[%s597 + $0x3c] sm:$0xf]
        %v756 = vld [vmem:[%s606] sm:$0xf]
        %v757 = vld [vmem:[%s606 + $0x4] sm:$0xf]
        %v758 = vld [vmem:[%s606 + $0x8] sm:$0xf]
        %v759 = vld [vmem:[%s606 + $0xc] sm:$0xf]
        %v760 = vld [vmem:[%s606 + $0x10] sm:$0xf]
        %v761 = vld [vmem:[%s606 + $0x14] sm:$0xf]
        %v762 = vld [vmem:[%s606 + $0x18] sm:$0xf]
        %v763 = vld [vmem:[%s606 + $0x1c] sm:$0xf]
        %v764 = vld [vmem:[%s606 + $0x20] sm:$0xf]
        %v765 = vld [vmem:[%s606 + $0x24] sm:$0xf]
        %v766 = vld [vmem:[%s606 + $0x28] sm:$0xf]
        %v767 = vld [vmem:[%s606 + $0x2c] sm:$0xf]
        %v768 = vld [vmem:[%s606 + $0x30] sm:$0xf]
        %v769 = vld [vmem:[%s606 + $0x34] sm:$0xf]
        %v770 = vld [vmem:[%s606 + $0x38] sm:$0xf]
        %v771 = vld [vmem:[%s606 + $0x3c] sm:$0xf]
        %v772 = vld [vmem:[#allocation8] sm:$0xff]
        %v773 = vld [vmem:[#allocation8 + $0x8] sm:$0xff]
        %v774 = vld [vmem:[#allocation8 + $0x10] sm:$0xff]
        %v775 = vld [vmem:[#allocation8 + $0x18] sm:$0xff]
        %v776 = vld [vmem:[#allocation8 + $0x20] sm:$0xff]
        %v777 = vld [vmem:[#allocation8 + $0x28] sm:$0xff]
        %v778 = vld [vmem:[#allocation8 + $0x30] sm:$0xff]
        %v779 = vld [vmem:[#allocation8 + $0x38] sm:$0xff]
        %v780 = vld [vmem:[#allocation8 + $0x40] sm:$0xff]
        %v781 = vld [vmem:[#allocation8 + $0x48] sm:$0xff]
        %v782 = vld [vmem:[#allocation8 + $0x50] sm:$0xff]
        %v783 = vld [vmem:[#allocation8 + $0x58] sm:$0xff]
        %v784 = vld [vmem:[#allocation8 + $0x60] sm:$0xff]
        %v785 = vld [vmem:[#allocation8 + $0x68] sm:$0xff]
        %v786 = vld [vmem:[#allocation8 + $0x70] sm:$0xff]
        %v787 = vld [vmem:[#allocation8 + $0x78] sm:$0xff]
        %v788 = vld [vmem:[%s4] sm:$0x3]
        %v790 = vlaneseq
        %v791 = vshrl.u32 %v790, 7
        %v792 = vsub.s32 0, %v791
        %v793 = vrot.slane %v788, %v792
        %v794 = vlaneseq
        %v795 = vshrl.u32 %v794, 7
        %v796 = vsub.s32 1, %v795
        %v797 = vrot.slane %v788, %v796
        %v816 = vunpack.c.l.b16 %v724
        %v817 = vunpack.c.l.b16 %v725
        %v818 = vunpack.c.l.b16 %v726
        %v819 = vunpack.c.l.b16 %v727
        %v820 = vunpack.c.l.b16 %v728
        %v821 = vunpack.c.l.b16 %v729
        %v822 = vunpack.c.l.b16 %v730
        %v823 = vunpack.c.l.b16 %v731
        %v824 = vunpack.c.l.b16 %v732
        %v825 = vunpack.c.l.b16 %v733
        %v826 = vunpack.c.l.b16 %v734
        %v827 = vunpack.c.l.b16 %v735
        %v828 = vunpack.c.l.b16 %v736
        %v829 = vunpack.c.l.b16 %v737
        %v830 = vunpack.c.l.b16 %v738
        %v831 = vunpack.c.l.b16 %v739
        %v832 = vpack.c.b16 %v817, %v816
        %v833 = vpack.c.b16 %v819, %v818
        %v834 = vpack.c.b16 %v821, %v820
        %v835 = vpack.c.b16 %v823, %v822
        %v836 = vpack.c.b16 %v825, %v824
        %v837 = vpack.c.b16 %v827, %v826
        %v838 = vpack.c.b16 %v829, %v828
        %v839 = vpack.c.b16 %v831, %v830
        %v864 = vunpack.c.l.b16 %v772
        %v865 = vunpack.c.h.b16 %v772
        %v866 = vunpack.c.l.b16 %v773
        %v867 = vunpack.c.h.b16 %v773
        %v868 = vunpack.c.l.b16 %v774
        %v869 = vunpack.c.h.b16 %v774
        %v870 = vunpack.c.l.b16 %v775
        %v871 = vunpack.c.h.b16 %v775
        %v872 = vunpack.c.l.b16 %v776
        %v873 = vunpack.c.h.b16 %v776
        %v874 = vunpack.c.l.b16 %v777
        %v875 = vunpack.c.h.b16 %v777
        %v876 = vunpack.c.l.b16 %v778
        %v877 = vunpack.c.h.b16 %v778
        %v878 = vunpack.c.l.b16 %v779
        %v879 = vunpack.c.h.b16 %v779
        %v880 = vunpack.c.l.b16 %v780
        %v881 = vunpack.c.h.b16 %v780
        %v882 = vunpack.c.l.b16 %v781
        %v883 = vunpack.c.h.b16 %v781
        %v884 = vunpack.c.l.b16 %v782
        %v885 = vunpack.c.h.b16 %v782
        %v886 = vunpack.c.l.b16 %v783
        %v887 = vunpack.c.h.b16 %v783
        %v888 = vunpack.c.l.b16 %v784
        %v889 = vunpack.c.h.b16 %v784
        %v890 = vunpack.c.l.b16 %v785
        %v891 = vunpack.c.h.b16 %v785
        %v892 = vunpack.c.l.b16 %v786
        %v893 = vunpack.c.h.b16 %v786
        %v894 = vunpack.c.l.b16 %v787
        %v895 = vunpack.c.h.b16 %v787
        %v896 = vpack.c.b16 %v866, %v864
        %v897 = vpack.c.b16 %v867, %v865
        %v898 = vpack.c.b16 %v870, %v868
        %v899 = vpack.c.b16 %v871, %v869
        %v900 = vpack.c.b16 %v874, %v872
        %v901 = vpack.c.b16 %v875, %v873
        %v902 = vpack.c.b16 %v878, %v876
        %v903 = vpack.c.b16 %v879, %v877
        %v904 = vpack.c.b16 %v882, %v880
        %v905 = vpack.c.b16 %v883, %v881
        %v906 = vpack.c.b16 %v886, %v884
        %v907 = vpack.c.b16 %v887, %v885
        %v908 = vpack.c.b16 %v890, %v888
        %v909 = vpack.c.b16 %v891, %v889
        %v910 = vpack.c.b16 %v894, %v892
        %v911 = vpack.c.b16 %v895, %v893
        %928 = vmatprep.subr.bf16.mxu0 %v911
        %929 = vmatpush1.bf16.msra.mxu0 %v910
        %930 = vmatprep.subr.bf16.mxu0 %v909
        %931 = vmatpush1.bf16.msra.mxu0 %v908
        %932 = vmatprep.subr.bf16.mxu0 %v907
        %933 = vmatpush1.bf16.msra.mxu0 %v906
        %934 = vmatprep.subr.bf16.mxu0 %v905
        %935 = vmatpush1.bf16.msra.mxu0 %v904
        %936 = vmatprep.subr.bf16.mxu0 %v903
        %937 = vmatpush1.bf16.msra.mxu0 %v902
        %938 = vmatprep.subr.bf16.mxu0 %v901
        %939 = vmatpush1.bf16.msra.mxu0 %v900
        %940 = vmatprep.subr.bf16.mxu0 %v899
        %941 = vmatpush1.bf16.msra.mxu0 %v898
        %942 = vmatprep.subr.bf16.mxu0 %v897
        %943 = vmatpush1.bf16.msra.mxu0 %v896
        %944 = vmatprep.subr.bf16.mxu0 0
        %945 = vmatpush2.bf16.msra.mxu0 0
        %946 = vmatprep.subr.bf16.mxu0 0
        %947 = vmatpush2.bf16.msra.mxu0 0
        %948 = vmatprep.subr.bf16.mxu0 0
        %949 = vmatpush2.bf16.msra.mxu0 0
        %950 = vmatprep.subr.bf16.mxu0 0
        %951 = vmatpush2.bf16.msra.mxu0 0
        %952 = vmatprep.subr.bf16.mxu0 0
        %953 = vmatpush2.bf16.msra.mxu0 0
        %954 = vmatprep.subr.bf16.mxu0 0
        %955 = vmatpush2.bf16.msra.mxu0 0
        %956 = vmatprep.subr.bf16.mxu0 0
        %957 = vmatpush2.bf16.msra.mxu0 0
        %958 = vmatprep.subr.bf16.mxu0 0
        %959 = vmatpush2.bf16.msra.mxu0 0
        %960 = vmatprep.mubr.bf16.mxu0 0
        %961 = vmatmul.mubr.bf16.gmra.mxu0 %v832
        %v962 = vpop.f32.mrf.mxu0
        %v963 = vadd.f32 %v793, %v962
        %v964 = vpop.f32.mrf.mxu0
        %v965 = vadd.f32 %v797, %v964
        %v966 = vpop.f32.mrf.mxu0
        %v967 = vadd.f32 %v793, %v966
        %v968 = vpop.f32.mrf.mxu0
        %v969 = vadd.f32 %v797, %v968
        %970 = vmatprep.mubr.bf16.mxu0 0
        %971 = vmatmul.mubr.bf16.gmra.mxu0 %v833
        %v972 = vpop.f32.mrf.mxu0
        %v973 = vadd.f32 %v793, %v972
        %v974 = vpop.f32.mrf.mxu0
        %v975 = vadd.f32 %v797, %v974
        %v976 = vpop.f32.mrf.mxu0
        %v977 = vadd.f32 %v793, %v976
        %v978 = vpop.f32.mrf.mxu0
        %v979 = vadd.f32 %v797, %v978
        %980 = vmatprep.mubr.bf16.mxu0 0
        %981 = vmatmul.mubr.bf16.gmra.mxu0 %v834
        %v982 = vpop.f32.mrf.mxu0
        %v983 = vadd.f32 %v793, %v982
        %v984 = vpop.f32.mrf.mxu0
        %v985 = vadd.f32 %v797, %v984
        %v986 = vpop.f32.mrf.mxu0
        %v987 = vadd.f32 %v793, %v986
        %v988 = vpop.f32.mrf.mxu0
        %v989 = vadd.f32 %v797, %v988
        %990 = vmatprep.mubr.bf16.mxu0 0
        %991 = vmatmul.mubr.bf16.gmra.mxu0 %v835
        %v992 = vpop.f32.mrf.mxu0
        %v993 = vadd.f32 %v793, %v992
        %v994 = vpop.f32.mrf.mxu0
        %v995 = vadd.f32 %v797, %v994
        %v996 = vpop.f32.mrf.mxu0
        %v997 = vadd.f32 %v793, %v996
        %v998 = vpop.f32.mrf.mxu0
        %v999 = vadd.f32 %v797, %v998
        %1000 = vmatprep.mubr.bf16.mxu0 0
        %1001 = vmatmul.mubr.bf16.gmra.mxu0 %v836
        %v1002 = vpop.f32.mrf.mxu0
        %v1003 = vadd.f32 %v793, %v1002
        %v1004 = vpop.f32.mrf.mxu0
        %v1005 = vadd.f32 %v797, %v1004
        %v1006 = vpop.f32.mrf.mxu0
        %v1007 = vadd.f32 %v793, %v1006
        %v1008 = vpop.f32.mrf.mxu0
        %v1009 = vadd.f32 %v797, %v1008
        %1010 = vmatprep.mubr.bf16.mxu0 0
        %1011 = vmatmul.mubr.bf16.gmra.mxu0 %v837
        %v1012 = vpop.f32.mrf.mxu0
        %v1013 = vadd.f32 %v793, %v1012
        %v1014 = vpop.f32.mrf.mxu0
        %v1015 = vadd.f32 %v797, %v1014
        %v1016 = vpop.f32.mrf.mxu0
        %v1017 = vadd.f32 %v793, %v1016
        %v1018 = vpop.f32.mrf.mxu0
        %v1019 = vadd.f32 %v797, %v1018
        %1020 = vmatprep.mubr.bf16.mxu0 0
        %1021 = vmatmul.mubr.bf16.gmra.mxu0 %v838
        %v1022 = vpop.f32.mrf.mxu0
        %v1023 = vadd.f32 %v793, %v1022
        %v1024 = vpop.f32.mrf.mxu0
        %v1025 = vadd.f32 %v797, %v1024
        %v1026 = vpop.f32.mrf.mxu0
        %v1027 = vadd.f32 %v793, %v1026
        %v1028 = vpop.f32.mrf.mxu0
        %v1029 = vadd.f32 %v797, %v1028
        %1030 = vmatprep.mubr.bf16.mxu0 0
        %1031 = vmatmul.mubr.bf16.gmra.mxu0 %v839
        %v1032 = vpop.f32.mrf.mxu0
        %v1033 = vadd.f32 %v793, %v1032
        %v1034 = vpop.f32.mrf.mxu0
        %v1035 = vadd.f32 %v797, %v1034
        %v1036 = vpop.f32.mrf.mxu0
        %v1037 = vadd.f32 %v793, %v1036
        %v1038 = vpop.f32.mrf.mxu0
        %v1039 = vadd.f32 %v797, %v1038
        %1040 = vdwg.mxu0
        %v1041 = vld [vmem:[#allocation10] sm:$0xf]
        %v1042 = vld [vmem:[#allocation10 + $0x4] sm:$0xf]
        %v1043 = vld [vmem:[#allocation10 + $0x8] sm:$0xf]
        %v1044 = vld [vmem:[#allocation10 + $0xc] sm:$0xf]
        %v1045 = vld [vmem:[#allocation10 + $0x10] sm:$0xf]
        %v1046 = vld [vmem:[#allocation10 + $0x14] sm:$0xf]
        %v1047 = vld [vmem:[#allocation10 + $0x18] sm:$0xf]
        %v1048 = vld [vmem:[#allocation10 + $0x1c] sm:$0xf]
        %v1049 = vld [vmem:[#allocation10 + $0x20] sm:$0xf]
        %v1050 = vld [vmem:[#allocation10 + $0x24] sm:$0xf]
        %v1051 = vld [vmem:[#allocation10 + $0x28] sm:$0xf]
        %v1052 = vld [vmem:[#allocation10 + $0x2c] sm:$0xf]
        %v1053 = vld [vmem:[#allocation10 + $0x30] sm:$0xf]
        %v1054 = vld [vmem:[#allocation10 + $0x34] sm:$0xf]
        %v1055 = vld [vmem:[#allocation10 + $0x38] sm:$0xf]
        %v1056 = vld [vmem:[#allocation10 + $0x3c] sm:$0xf]
        %v1057 = vld [vmem:[%s7] sm:$0x1]
        %v1058 = vlaneseq
        %v1059 = vshrl.u32 %v1058, 7
        %v1060 = vsub.s32 0, %v1059
        %v1061 = vrot.slane %v1057, %v1060
        %v1078 = vunpack.c.l.b16 %v740
        %v1079 = vunpack.c.l.b16 %v741
        %v1080 = vunpack.c.l.b16 %v742
        %v1081 = vunpack.c.l.b16 %v743
        %v1082 = vunpack.c.l.b16 %v744
        %v1083 = vunpack.c.l.b16 %v745
        %v1084 = vunpack.c.l.b16 %v746
        %v1085 = vunpack.c.l.b16 %v747
        %v1086 = vunpack.c.l.b16 %v748
        %v1087 = vunpack.c.l.b16 %v749
        %v1088 = vunpack.c.l.b16 %v750
        %v1089 = vunpack.c.l.b16 %v751
        %v1090 = vunpack.c.l.b16 %v752
        %v1091 = vunpack.c.l.b16 %v753
        %v1092 = vunpack.c.l.b16 %v754
        %v1093 = vunpack.c.l.b16 %v755
        %v1094 = vpack.c.b16 %v1079, %v1078
        %v1095 = vpack.c.b16 %v1081, %v1080
        %v1096 = vpack.c.b16 %v1083, %v1082
        %v1097 = vpack.c.b16 %v1085, %v1084
        %v1098 = vpack.c.b16 %v1087, %v1086
        %v1099 = vpack.c.b16 %v1089, %v1088
        %v1100 = vpack.c.b16 %v1091, %v1090
        %v1101 = vpack.c.b16 %v1093, %v1092
        %v1126 = vunpack.c.l.b16 %v1041
        %v1127 = vunpack.c.l.b16 %v1042
        %v1128 = vunpack.c.l.b16 %v1043
        %v1129 = vunpack.c.l.b16 %v1044
        %v1130 = vunpack.c.l.b16 %v1045
        %v1131 = vunpack.c.l.b16 %v1046
        %v1132 = vunpack.c.l.b16 %v1047
        %v1133 = vunpack.c.l.b16 %v1048
        %v1134 = vunpack.c.l.b16 %v1049
        %v1135 = vunpack.c.l.b16 %v1050
        %v1136 = vunpack.c.l.b16 %v1051
        %v1137 = vunpack.c.l.b16 %v1052
        %v1138 = vunpack.c.l.b16 %v1053
        %v1139 = vunpack.c.l.b16 %v1054
        %v1140 = vunpack.c.l.b16 %v1055
        %v1141 = vunpack.c.l.b16 %v1056
        %v1142 = vpack.c.b16 %v1127, %v1126
        %v1143 = vpack.c.b16 %v1129, %v1128
        %v1144 = vpack.c.b16 %v1131, %v1130
        %v1145 = vpack.c.b16 %v1133, %v1132
        %v1146 = vpack.c.b16 %v1135, %v1134
        %v1147 = vpack.c.b16 %v1137, %v1136
        %v1148 = vpack.c.b16 %v1139, %v1138
        %v1149 = vpack.c.b16 %v1141, %v1140
        %1158 = vmatprep.subr.bf16.mxu0 0
        %1159 = vmatpush1.bf16.msra.mxu0 %v1149
        %1160 = vmatprep.subr.bf16.mxu0 0
        %1161 = vmatpush1.bf16.msra.mxu0 %v1148
        %1162 = vmatprep.subr.bf16.mxu0 0
        %1163 = vmatpush1.bf16.msra.mxu0 %v1147
        %1164 = vmatprep.subr.bf16.mxu0 0
        %1165 = vmatpush1.bf16.msra.mxu0 %v1146
        %1166 = vmatprep.subr.bf16.mxu0 0
        %1167 = vmatpush1.bf16.msra.mxu0 %v1145
        %1168 = vmatprep.subr.bf16.mxu0 0
        %1169 = vmatpush1.bf16.msra.mxu0 %v1144
        %1170 = vmatprep.subr.bf16.mxu0 0
        %1171 = vmatpush1.bf16.msra.mxu0 %v1143
        %1172 = vmatprep.subr.bf16.mxu0 0
        %1173 = vmatpush1.bf16.msra.mxu0 %v1142
        %1174 = vmatprep.subr.bf16.mxu0 0
        %1175 = vmatpush2.bf16.msra.mxu0 0
        %1176 = vmatprep.subr.bf16.mxu0 0
        %1177 = vmatpush2.bf16.msra.mxu0 0
        %1178 = vmatprep.subr.bf16.mxu0 0
        %1179 = vmatpush2.bf16.msra.mxu0 0
        %1180 = vmatprep.subr.bf16.mxu0 0
        %1181 = vmatpush2.bf16.msra.mxu0 0
        %1182 = vmatprep.subr.bf16.mxu0 0
        %1183 = vmatpush2.bf16.msra.mxu0 0
        %1184 = vmatprep.subr.bf16.mxu0 0
        %1185 = vmatpush2.bf16.msra.mxu0 0
        %1186 = vmatprep.subr.bf16.mxu0 0
        %1187 = vmatpush2.bf16.msra.mxu0 0
        %1188 = vmatprep.subr.bf16.mxu0 0
        %1189 = vmatpush2.bf16.msra.mxu0 0
        %1190 = vmatprep.mubr.bf16.mxu0 0
        %1191 = vmatmul.mubr.bf16.gmra.mxu0 %v1094
        %v1192 = vpop.f32.mrf.mxu0
        %v1193 = vadd.f32 %v1061, %v1192
        %v1194 = vpop.f32.mrf.mxu0
        %v1195 = vpop.f32.mrf.mxu0
        %v1196 = vadd.f32 %v1061, %v1195
        %v1197 = vpop.f32.mrf.mxu0
        %1198 = vmatprep.mubr.bf16.mxu0 0
        %1199 = vmatmul.mubr.bf16.gmra.mxu0 %v1095
        %v1200 = vpop.f32.mrf.mxu0
        %v1201 = vadd.f32 %v1061, %v1200
        %v1202 = vpop.f32.mrf.mxu0
        %v1203 = vpop.f32.mrf.mxu0
        %v1204 = vadd.f32 %v1061, %v1203
        %v1205 = vpop.f32.mrf.mxu0
        %1206 = vmatprep.mubr.bf16.mxu0 0
        %1207 = vmatmul.mubr.bf16.gmra.mxu0 %v1096
        %v1208 = vpop.f32.mrf.mxu0
        %v1209 = vadd.f32 %v1061, %v1208
        %v1210 = vpop.f32.mrf.mxu0
        %v1211 = vpop.f32.mrf.mxu0
        %v1212 = vadd.f32 %v1061, %v1211
        %v1213 = vpop.f32.mrf.mxu0
        %1214 = vmatprep.mubr.bf16.mxu0 0
        %1215 = vmatmul.mubr.bf16.gmra.mxu0 %v1097
        %v1216 = vpop.f32.mrf.mxu0
        %v1217 = vadd.f32 %v1061, %v1216
        %v1218 = vpop.f32.mrf.mxu0
        %v1219 = vpop.f32.mrf.mxu0
        %v1220 = vadd.f32 %v1061, %v1219
        %v1221 = vpop.f32.mrf.mxu0
        %1222 = vmatprep.mubr.bf16.mxu0 0
        %1223 = vmatmul.mubr.bf16.gmra.mxu0 %v1098
        %v1224 = vpop.f32.mrf.mxu0
        %v1225 = vadd.f32 %v1061, %v1224
        %v1226 = vpop.f32.mrf.mxu0
        %v1227 = vpop.f32.mrf.mxu0
        %v1228 = vadd.f32 %v1061, %v1227
        %v1229 = vpop.f32.mrf.mxu0
        %1230 = vmatprep.mubr.bf16.mxu0 0
        %1231 = vmatmul.mubr.bf16.gmra.mxu0 %v1099
        %v1232 = vpop.f32.mrf.mxu0
        %v1233 = vadd.f32 %v1061, %v1232
        %v1234 = vpop.f32.mrf.mxu0
        %v1235 = vpop.f32.mrf.mxu0
        %v1236 = vadd.f32 %v1061, %v1235
        %v1237 = vpop.f32.mrf.mxu0
        %1238 = vmatprep.mubr.bf16.mxu0 0
        %1239 = vmatmul.mubr.bf16.gmra.mxu0 %v1100
        %v1240 = vpop.f32.mrf.mxu0
        %v1241 = vadd.f32 %v1061, %v1240
        %v1242 = vpop.f32.mrf.mxu0
        %v1243 = vpop.f32.mrf.mxu0
        %v1244 = vadd.f32 %v1061, %v1243
        %v1245 = vpop.f32.mrf.mxu0
        %1246 = vmatprep.mubr.bf16.mxu0 0
        %1247 = vmatmul.mubr.bf16.gmra.mxu0 %v1101
        %v1248 = vpop.f32.mrf.mxu0
        %v1249 = vadd.f32 %v1061, %v1248
        %v1250 = vpop.f32.mrf.mxu0
        %v1251 = vpop.f32.mrf.mxu0
        %v1252 = vadd.f32 %v1061, %v1251
        %v1253 = vpop.f32.mrf.mxu0
        %1254 = vdwg.mxu0
        %v1255 = vld [vmem:[#allocation11] sm:$0xf]
        %v1256 = vld [vmem:[#allocation11 + $0x4] sm:$0xf]
        %v1257 = vld [vmem:[#allocation11 + $0x8] sm:$0xf]
        %v1258 = vld [vmem:[#allocation11 + $0xc] sm:$0xf]
        %v1259 = vld [vmem:[#allocation11 + $0x10] sm:$0xf]
        %v1260 = vld [vmem:[#allocation11 + $0x14] sm:$0xf]
        %v1261 = vld [vmem:[#allocation11 + $0x18] sm:$0xf]
        %v1262 = vld [vmem:[#allocation11 + $0x1c] sm:$0xf]
        %v1263 = vld [vmem:[#allocation11 + $0x20] sm:$0xf]
        %v1264 = vld [vmem:[#allocation11 + $0x24] sm:$0xf]
        %v1265 = vld [vmem:[#allocation11 + $0x28] sm:$0xf]
        %v1266 = vld [vmem:[#allocation11 + $0x2c] sm:$0xf]
        %v1267 = vld [vmem:[#allocation11 + $0x30] sm:$0xf]
        %v1268 = vld [vmem:[#allocation11 + $0x34] sm:$0xf]
        %v1269 = vld [vmem:[#allocation11 + $0x38] sm:$0xf]
        %v1270 = vld [vmem:[#allocation11 + $0x3c] sm:$0xf]
        %v1271 = vld [vmem:[%s7 + $0x1] sm:$0x1]
        %v1272 = vlaneseq
        %v1273 = vshrl.u32 %v1272, 7
        %v1274 = vsub.s32 0, %v1273
        %v1275 = vrot.slane %v1271, %v1274
        %v1292 = vunpack.c.l.b16 %v756
        %v1293 = vunpack.c.l.b16 %v757
        %v1294 = vunpack.c.l.b16 %v758
        %v1295 = vunpack.c.l.b16 %v759
        %v1296 = vunpack.c.l.b16 %v760
        %v1297 = vunpack.c.l.b16 %v761
        %v1298 = vunpack.c.l.b16 %v762
        %v1299 = vunpack.c.l.b16 %v763
        %v1300 = vunpack.c.l.b16 %v764
        %v1301 = vunpack.c.l.b16 %v765
        %v1302 = vunpack.c.l.b16 %v766
        %v1303 = vunpack.c.l.b16 %v767
        %v1304 = vunpack.c.l.b16 %v768
        %v1305 = vunpack.c.l.b16 %v769
        %v1306 = vunpack.c.l.b16 %v770
        %v1307 = vunpack.c.l.b16 %v771
        %v1308 = vpack.c.b16 %v1293, %v1292
        %v1309 = vpack.c.b16 %v1295, %v1294
        %v1310 = vpack.c.b16 %v1297, %v1296
        %v1311 = vpack.c.b16 %v1299, %v1298
        %v1312 = vpack.c.b16 %v1301, %v1300
        %v1313 = vpack.c.b16 %v1303, %v1302
        %v1314 = vpack.c.b16 %v1305, %v1304
        %v1315 = vpack.c.b16 %v1307, %v1306
        %v1340 = vunpack.c.l.b16 %v1255
        %v1341 = vunpack.c.l.b16 %v1256
        %v1342 = vunpack.c.l.b16 %v1257
        %v1343 = vunpack.c.l.b16 %v1258
        %v1344 = vunpack.c.l.b16 %v1259
        %v1345 = vunpack.c.l.b16 %v1260
        %v1346 = vunpack.c.l.b16 %v1261
        %v1347 = vunpack.c.l.b16 %v1262
        %v1348 = vunpack.c.l.b16 %v1263
        %v1349 = vunpack.c.l.b16 %v1264
        %v1350 = vunpack.c.l.b16 %v1265
        %v1351 = vunpack.c.l.b16 %v1266
        %v1352 = vunpack.c.l.b16 %v1267
        %v1353 = vunpack.c.l.b16 %v1268
        %v1354 = vunpack.c.l.b16 %v1269
        %v1355 = vunpack.c.l.b16 %v1270
        %v1356 = vpack.c.b16 %v1341, %v1340
        %v1357 = vpack.c.b16 %v1343, %v1342
        %v1358 = vpack.c.b16 %v1345, %v1344
        %v1359 = vpack.c.b16 %v1347, %v1346
        %v1360 = vpack.c.b16 %v1349, %v1348
        %v1361 = vpack.c.b16 %v1351, %v1350
        %v1362 = vpack.c.b16 %v1353, %v1352
        %v1363 = vpack.c.b16 %v1355, %v1354
        %1372 = vmatprep.subr.bf16.mxu0 0
        %1373 = vmatpush1.bf16.msra.mxu0 %v1363
        %1374 = vmatprep.subr.bf16.mxu0 0
        %1375 = vmatpush1.bf16.msra.mxu0 %v1362
        %1376 = vmatprep.subr.bf16.mxu0 0
        %1377 = vmatpush1.bf16.msra.mxu0 %v1361
        %1378 = vmatprep.subr.bf16.mxu0 0
        %1379 = vmatpush1.bf16.msra.mxu0 %v1360
        %1380 = vmatprep.subr.bf16.mxu0 0
        %1381 = vmatpush1.bf16.msra.mxu0 %v1359
        %1382 = vmatprep.subr.bf16.mxu0 0
        %1383 = vmatpush1.bf16.msra.mxu0 %v1358
        %1384 = vmatprep.subr.bf16.mxu0 0
        %1385 = vmatpush1.bf16.msra.mxu0 %v1357
        %1386 = vmatprep.subr.bf16.mxu0 0
        %1387 = vmatpush1.bf16.msra.mxu0 %v1356
        %1388 = vmatprep.subr.bf16.mxu0 0
        %1389 = vmatpush2.bf16.msra.mxu0 0
        %1390 = vmatprep.subr.bf16.mxu0 0
        %1391 = vmatpush2.bf16.msra.mxu0 0
        %1392 = vmatprep.subr.bf16.mxu0 0
        %1393 = vmatpush2.bf16.msra.mxu0 0
        %1394 = vmatprep.subr.bf16.mxu0 0
        %1395 = vmatpush2.bf16.msra.mxu0 0
        %1396 = vmatprep.subr.bf16.mxu0 0
        %1397 = vmatpush2.bf16.msra.mxu0 0
        %1398 = vmatprep.subr.bf16.mxu0 0
        %1399 = vmatpush2.bf16.msra.mxu0 0
        %1400 = vmatprep.subr.bf16.mxu0 0
        %1401 = vmatpush2.bf16.msra.mxu0 0
        %1402 = vmatprep.subr.bf16.mxu0 0
        %1403 = vmatpush2.bf16.msra.mxu0 0
        %1404 = vmatprep.mubr.bf16.mxu0 0
        %1405 = vmatmul.mubr.bf16.gmra.mxu0 %v1308
        %v1406 = vpop.f32.mrf.mxu0
        %v1407 = vadd.f32 %v1275, %v1406
        %v1408 = vpop.f32.mrf.mxu0
        %v1409 = vpop.f32.mrf.mxu0
        %v1410 = vadd.f32 %v1275, %v1409
        %v1411 = vpop.f32.mrf.mxu0
        %1412 = vmatprep.mubr.bf16.mxu0 0
        %1413 = vmatmul.mubr.bf16.gmra.mxu0 %v1309
        %v1414 = vpop.f32.mrf.mxu0
        %v1415 = vadd.f32 %v1275, %v1414
        %v1416 = vpop.f32.mrf.mxu0
        %v1417 = vpop.f32.mrf.mxu0
        %v1418 = vadd.f32 %v1275, %v1417
        %v1419 = vpop.f32.mrf.mxu0
        %1420 = vmatprep.mubr.bf16.mxu0 0
        %1421 = vmatmul.mubr.bf16.gmra.mxu0 %v1310
        %v1422 = vpop.f32.mrf.mxu0
        %v1423 = vadd.f32 %v1275, %v1422
        %v1424 = vpop.f32.mrf.mxu0
        %v1425 = vpop.f32.mrf.mxu0
        %v1426 = vadd.f32 %v1275, %v1425
        %v1427 = vpop.f32.mrf.mxu0
        %1428 = vmatprep.mubr.bf16.mxu0 0
        %1429 = vmatmul.mubr.bf16.gmra.mxu0 %v1311
        %v1430 = vpop.f32.mrf.mxu0
        %v1431 = vadd.f32 %v1275, %v1430
        %v1432 = vpop.f32.mrf.mxu0
        %v1433 = vpop.f32.mrf.mxu0
        %v1434 = vadd.f32 %v1275, %v1433
        %v1435 = vpop.f32.mrf.mxu0
        %1436 = vmatprep.mubr.bf16.mxu0 0
        %1437 = vmatmul.mubr.bf16.gmra.mxu0 %v1312
        %v1438 = vpop.f32.mrf.mxu0
        %v1439 = vadd.f32 %v1275, %v1438
        %v1440 = vpop.f32.mrf.mxu0
        %v1441 = vpop.f32.mrf.mxu0
        %v1442 = vadd.f32 %v1275, %v1441
        %v1443 = vpop.f32.mrf.mxu0
        %1444 = vmatprep.mubr.bf16.mxu0 0
        %1445 = vmatmul.mubr.bf16.gmra.mxu0 %v1313
        %v1446 = vpop.f32.mrf.mxu0
        %v1447 = vadd.f32 %v1275, %v1446
        %v1448 = vpop.f32.mrf.mxu0
        %v1449 = vpop.f32.mrf.mxu0
        %v1450 = vadd.f32 %v1275, %v1449
        %v1451 = vpop.f32.mrf.mxu0
        %1452 = vmatprep.mubr.bf16.mxu0 0
        %1453 = vmatmul.mubr.bf16.gmra.mxu0 %v1314
        %v1454 = vpop.f32.mrf.mxu0
        %v1455 = vadd.f32 %v1275, %v1454
        %v1456 = vpop.f32.mrf.mxu0
        %v1457 = vpop.f32.mrf.mxu0
        %v1458 = vadd.f32 %v1275, %v1457
        %v1459 = vpop.f32.mrf.mxu0
        %1460 = vmatprep.mubr.bf16.mxu0 0
        %1461 = vmatmul.mubr.bf16.gmra.mxu0 %v1315
        %v1462 = vpop.f32.mrf.mxu0
        %v1463 = vadd.f32 %v1275, %v1462
        %v1464 = vpop.f32.mrf.mxu0
        %v1465 = vpop.f32.mrf.mxu0
        %v1466 = vadd.f32 %v1275, %v1465
        %v1467 = vpop.f32.mrf.mxu0
        %1468 = vdwg.mxu0
        %v1469 = vld [vmem:[%s627] sm:$0xff]
        %v1470 = vld [vmem:[%s627 + $0x8] sm:$0xff]
        %v1471 = vld [vmem:[%s627 + $0x10] sm:$0xff]
        %v1472 = vld [vmem:[%s627 + $0x18] sm:$0xff]
        %v1473 = vld [vmem:[%s627 + $0x20] sm:$0xff]
        %v1474 = vld [vmem:[%s627 + $0x28] sm:$0xff]
        %v1475 = vld [vmem:[%s627 + $0x30] sm:$0xff]
        %v1476 = vld [vmem:[%s627 + $0x38] sm:$0xff]
        %v1477 = vld [vmem:[%s627 + $0x40] sm:$0xff]
        %v1478 = vld [vmem:[%s627 + $0x48] sm:$0xff]
        %v1479 = vld [vmem:[%s627 + $0x50] sm:$0xff]
        %v1480 = vld [vmem:[%s627 + $0x58] sm:$0xff]
        %v1481 = vld [vmem:[%s627 + $0x60] sm:$0xff]
        %v1482 = vld [vmem:[%s627 + $0x68] sm:$0xff]
        %v1483 = vld [vmem:[%s627 + $0x70] sm:$0xff]
        %v1484 = vld [vmem:[%s627 + $0x78] sm:$0xff]
        %v1485 = vld [vmem:[%s636] sm:$0xff]
        %v1486 = vld [vmem:[%s636 + $0x8] sm:$0xff]
        %v1487 = vld [vmem:[%s636 + $0x10] sm:$0xff]
        %v1488 = vld [vmem:[%s636 + $0x18] sm:$0xff]
        %v1489 = vld [vmem:[%s636 + $0x20] sm:$0xff]
        %v1490 = vld [vmem:[%s636 + $0x28] sm:$0xff]
        %v1491 = vld [vmem:[%s636 + $0x30] sm:$0xff]
        %v1492 = vld [vmem:[%s636 + $0x38] sm:$0xff]
        %v1493 = vld [vmem:[%s636 + $0x40] sm:$0xff]
        %v1494 = vld [vmem:[%s636 + $0x48] sm:$0xff]
        %v1495 = vld [vmem:[%s636 + $0x50] sm:$0xff]
        %v1496 = vld [vmem:[%s636 + $0x58] sm:$0xff]
        %v1497 = vld [vmem:[%s636 + $0x60] sm:$0xff]
        %v1498 = vld [vmem:[%s636 + $0x68] sm:$0xff]
        %v1499 = vld [vmem:[%s636 + $0x70] sm:$0xff]
        %v1500 = vld [vmem:[%s636 + $0x78] sm:$0xff]
        %v1501 = vlaneseq
        %v1502 = vand.u32 %v1501, 127
        %vm1503 = vcmp.lt.s32.totalorder %v1502, 0
        %v1504 = vsub.s32 0, %v1502
        %v1505 = vsel %vm1503, %v1504, %v1502
        %v1506 = vshrl.u32 %v1505, 1
        %v1507 = vand.u32 %v1505, 1
        %v1508 = vsub.s32 0, %v1507
        %v1509 = vsel %vm1503, %v1508, %v1507
        %vm1510 = vcmp.ne.s32.totalorder %v1509, 0
        %vm1511 = vcmp.lt.s32.totalorder %v1509, 0
        %vm1512 = vmand %vm1511, %vm1510
        %v1513 = vadd.s32 %v1509, 2
        %v1514 = vsel %vm1512, %v1513, %v1509
        %vm1515 = vcmp.eq.s32.totalorder %v1514, 0
        %v1516 = vmul.f32 %v963, %v1485
        %v1517 = vmul.f32 %v967, %v1486
        %v1518 = vmul.f32 %v973, %v1487
        %v1519 = vmul.f32 %v977, %v1488
        %v1520 = vmul.f32 %v983, %v1489
        %v1521 = vmul.f32 %v987, %v1490
        %v1522 = vmul.f32 %v993, %v1491
        %v1523 = vmul.f32 %v997, %v1492
        %v1524 = vmul.f32 %v1003, %v1493
        %v1525 = vmul.f32 %v1007, %v1494
        %v1526 = vmul.f32 %v1013, %v1495
        %v1527 = vmul.f32 %v1017, %v1496
        %v1528 = vmul.f32 %v1023, %v1497
        %v1529 = vmul.f32 %v1027, %v1498
        %v1530 = vmul.f32 %v1033, %v1499
        %v1531 = vmul.f32 %v1037, %v1500
        %1548 = vrot.lane.b32.xlu0 %v963, 127
        %v1549 = vpop.permute.xlu0 %1548
        %1550 = vrot.lane.b32.xlu0 %v967, 127
        %v1551 = vpop.permute.xlu0 %1550
        %1552 = vrot.lane.b32.xlu0 %v973, 127
        %v1553 = vpop.permute.xlu0 %1552
        %1554 = vrot.lane.b32.xlu0 %v977, 127
        %v1555 = vpop.permute.xlu0 %1554
        %1556 = vrot.lane.b32.xlu0 %v983, 127
        %v1557 = vpop.permute.xlu0 %1556
        %1558 = vrot.lane.b32.xlu0 %v987, 127
        %v1559 = vpop.permute.xlu0 %1558
        %1560 = vrot.lane.b32.xlu0 %v993, 127
        %v1561 = vpop.permute.xlu0 %1560
        %1562 = vrot.lane.b32.xlu0 %v997, 127
        %v1563 = vpop.permute.xlu0 %1562
        %1564 = vrot.lane.b32.xlu0 %v1003, 127
        %v1565 = vpop.permute.xlu0 %1564
        %1566 = vrot.lane.b32.xlu0 %v1007, 127
        %v1567 = vpop.permute.xlu0 %1566
        %1568 = vrot.lane.b32.xlu0 %v1013, 127
        %v1569 = vpop.permute.xlu0 %1568
        %1570 = vrot.lane.b32.xlu0 %v1017, 127
        %v1571 = vpop.permute.xlu0 %1570
        %1572 = vrot.lane.b32.xlu0 %v1023, 127
        %v1573 = vpop.permute.xlu0 %1572
        %1574 = vrot.lane.b32.xlu0 %v1027, 127
        %v1575 = vpop.permute.xlu0 %1574
        %1576 = vrot.lane.b32.xlu0 %v1033, 127
        %v1577 = vpop.permute.xlu0 %1576
        %1578 = vrot.lane.b32.xlu0 %v1037, 127
        %v1579 = vpop.permute.xlu0 %1578
        %1596 = vrot.lane.b32.xlu0 %v963, 1
        %v1597 = vpop.permute.xlu0 %1596
        %1598 = vrot.lane.b32.xlu0 %v967, 1
        %v1599 = vpop.permute.xlu0 %1598
        %1600 = vrot.lane.b32.xlu0 %v973, 1
        %v1601 = vpop.permute.xlu0 %1600
        %1602 = vrot.lane.b32.xlu0 %v977, 1
        %v1603 = vpop.permute.xlu0 %1602
        %1604 = vrot.lane.b32.xlu0 %v983, 1
        %v1605 = vpop.permute.xlu0 %1604
        %1606 = vrot.lane.b32.xlu0 %v987, 1
        %v1607 = vpop.permute.xlu0 %1606
        %1608 = vrot.lane.b32.xlu0 %v993, 1
        %v1609 = vpop.permute.xlu0 %1608
        %1610 = vrot.lane.b32.xlu0 %v997, 1
        %v1611 = vpop.permute.xlu0 %1610
        %1612 = vrot.lane.b32.xlu0 %v1003, 1
        %v1613 = vpop.permute.xlu0 %1612
        %1614 = vrot.lane.b32.xlu0 %v1007, 1
        %v1615 = vpop.permute.xlu0 %1614
        %1616 = vrot.lane.b32.xlu0 %v1013, 1
        %v1617 = vpop.permute.xlu0 %1616
        %1618 = vrot.lane.b32.xlu0 %v1017, 1
        %v1619 = vpop.permute.xlu0 %1618
        %1620 = vrot.lane.b32.xlu0 %v1023, 1
        %v1621 = vpop.permute.xlu0 %1620
        %1622 = vrot.lane.b32.xlu0 %v1027, 1
        %v1623 = vpop.permute.xlu0 %1622
        %1624 = vrot.lane.b32.xlu0 %v1033, 1
        %v1625 = vpop.permute.xlu0 %1624
        %1626 = vrot.lane.b32.xlu0 %v1037, 1
        %v1627 = vpop.permute.xlu0 %1626
        %v1644 = vsel %vm1515, 1, 0
        %vm1645 = vcmp.eq.s32.totalorder %v1644, 1
        %v1646 = vsel %vm1645, %v1549, %v1597
        %v1647 = vsel %vm1645, %v1551, %v1599
        %v1648 = vsel %vm1645, %v1553, %v1601
        %v1649 = vsel %vm1645, %v1555, %v1603
        %v1650 = vsel %vm1645, %v1557, %v1605
        %v1651 = vsel %vm1645, %v1559, %v1607
        %v1652 = vsel %vm1645, %v1561, %v1609
        %v1653 = vsel %vm1645, %v1563, %v1611
        %v1654 = vsel %vm1645, %v1565, %v1613
        %v1655 = vsel %vm1645, %v1567, %v1615
        %v1656 = vsel %vm1645, %v1569, %v1617
        %v1657 = vsel %vm1645, %v1571, %v1619
        %v1658 = vsel %vm1645, %v1573, %v1621
        %v1659 = vsel %vm1645, %v1575, %v1623
        %v1660 = vsel %vm1645, %v1577, %v1625
        %v1661 = vsel %vm1645, %v1579, %v1627
        %v1662 = vmul.f32 %v1646, %v1469
        %v1663 = vmul.f32 %v1647, %v1470
        %v1664 = vmul.f32 %v1648, %v1471
        %v1665 = vmul.f32 %v1649, %v1472
        %v1666 = vmul.f32 %v1650, %v1473
        %v1667 = vmul.f32 %v1651, %v1474
        %v1668 = vmul.f32 %v1652, %v1475
        %v1669 = vmul.f32 %v1653, %v1476
        %v1670 = vmul.f32 %v1654, %v1477
        %v1671 = vmul.f32 %v1655, %v1478
        %v1672 = vmul.f32 %v1656, %v1479
        %v1673 = vmul.f32 %v1657, %v1480
        %v1674 = vmul.f32 %v1658, %v1481
        %v1675 = vmul.f32 %v1659, %v1482
        %v1676 = vmul.f32 %v1660, %v1483
        %v1677 = vmul.f32 %v1661, %v1484
        %v1678 = vadd.f32 %v1516, %v1662
        %v1679 = vadd.f32 %v1517, %v1663
        %v1680 = vadd.f32 %v1518, %v1664
        %v1681 = vadd.f32 %v1519, %v1665
        %v1682 = vadd.f32 %v1520, %v1666
        %v1683 = vadd.f32 %v1521, %v1667
        %v1684 = vadd.f32 %v1522, %v1668
        %v1685 = vadd.f32 %v1523, %v1669
        %v1686 = vadd.f32 %v1524, %v1670
        %v1687 = vadd.f32 %v1525, %v1671
        %v1688 = vadd.f32 %v1526, %v1672
        %v1689 = vadd.f32 %v1527, %v1673
        %v1690 = vadd.f32 %v1528, %v1674
        %v1691 = vadd.f32 %v1529, %v1675
        %v1692 = vadd.f32 %v1530, %v1676
        %v1693 = vadd.f32 %v1531, %v1677
        %v1694 = vmul.f32 %v1193, %v1485
        %v1695 = vmul.f32 %v1196, %v1486
        %v1696 = vmul.f32 %v1201, %v1487
        %v1697 = vmul.f32 %v1204, %v1488
        %v1698 = vmul.f32 %v1209, %v1489
        %v1699 = vmul.f32 %v1212, %v1490
        %v1700 = vmul.f32 %v1217, %v1491
        %v1701 = vmul.f32 %v1220, %v1492
        %v1702 = vmul.f32 %v1225, %v1493
        %v1703 = vmul.f32 %v1228, %v1494
        %v1704 = vmul.f32 %v1233, %v1495
        %v1705 = vmul.f32 %v1236, %v1496
        %v1706 = vmul.f32 %v1241, %v1497
        %v1707 = vmul.f32 %v1244, %v1498
        %v1708 = vmul.f32 %v1249, %v1499
        %v1709 = vmul.f32 %v1252, %v1500
        %1726 = vrot.lane.b32.xlu0 %v1193, 127
        %v1727 = vpop.permute.xlu0 %1726
        %1728 = vrot.lane.b32.xlu0 %v1196, 127
        %v1729 = vpop.permute.xlu0 %1728
        %1730 = vrot.lane.b32.xlu0 %v1201, 127
        %v1731 = vpop.permute.xlu0 %1730
        %1732 = vrot.lane.b32.xlu0 %v1204, 127
        %v1733 = vpop.permute.xlu0 %1732
        %1734 = vrot.lane.b32.xlu0 %v1209, 127
        %v1735 = vpop.permute.xlu0 %1734
        %1736 = vrot.lane.b32.xlu0 %v1212, 127
        %v1737 = vpop.permute.xlu0 %1736
        %1738 = vrot.lane.b32.xlu0 %v1217, 127
        %v1739 = vpop.permute.xlu0 %1738
        %1740 = vrot.lane.b32.xlu0 %v1220, 127
        %v1741 = vpop.permute.xlu0 %1740
        %1742 = vrot.lane.b32.xlu0 %v1225, 127
        %v1743 = vpop.permute.xlu0 %1742
        %1744 = vrot.lane.b32.xlu0 %v1228, 127
        %v1745 = vpop.permute.xlu0 %1744
        %1746 = vrot.lane.b32.xlu0 %v1233, 127
        %v1747 = vpop.permute.xlu0 %1746
        %1748 = vrot.lane.b32.xlu0 %v1236, 127
        %v1749 = vpop.permute.xlu0 %1748
        %1750 = vrot.lane.b32.xlu0 %v1241, 127
        %v1751 = vpop.permute.xlu0 %1750
        %1752 = vrot.lane.b32.xlu0 %v1244, 127
        %v1753 = vpop.permute.xlu0 %1752
        %1754 = vrot.lane.b32.xlu0 %v1249, 127
        %v1755 = vpop.permute.xlu0 %1754
        %1756 = vrot.lane.b32.xlu0 %v1252, 127
        %v1757 = vpop.permute.xlu0 %1756
        %1774 = vrot.lane.b32.xlu0 %v1193, 1
        %v1775 = vpop.permute.xlu0 %1774
        %1776 = vrot.lane.b32.xlu0 %v1196, 1
        %v1777 = vpop.permute.xlu0 %1776
        %1778 = vrot.lane.b32.xlu0 %v1201, 1
        %v1779 = vpop.permute.xlu0 %1778
        %1780 = vrot.lane.b32.xlu0 %v1204, 1
        %v1781 = vpop.permute.xlu0 %1780
        %1782 = vrot.lane.b32.xlu0 %v1209, 1
        %v1783 = vpop.permute.xlu0 %1782
        %1784 = vrot.lane.b32.xlu0 %v1212, 1
        %v1785 = vpop.permute.xlu0 %1784
        %1786 = vrot.lane.b32.xlu0 %v1217, 1
        %v1787 = vpop.permute.xlu0 %1786
        %1788 = vrot.lane.b32.xlu0 %v1220, 1
        %v1789 = vpop.permute.xlu0 %1788
        %1790 = vrot.lane.b32.xlu0 %v1225, 1
        %v1791 = vpop.permute.xlu0 %1790
        %1792 = vrot.lane.b32.xlu0 %v1228, 1
        %v1793 = vpop.permute.xlu0 %1792
        %1794 = vrot.lane.b32.xlu0 %v1233, 1
        %v1795 = vpop.permute.xlu0 %1794
        %1796 = vrot.lane.b32.xlu0 %v1236, 1
        %v1797 = vpop.permute.xlu0 %1796
        %1798 = vrot.lane.b32.xlu0 %v1241, 1
        %v1799 = vpop.permute.xlu0 %1798
        %1800 = vrot.lane.b32.xlu0 %v1244, 1
        %v1801 = vpop.permute.xlu0 %1800
        %1802 = vrot.lane.b32.xlu0 %v1249, 1
        %v1803 = vpop.permute.xlu0 %1802
        %1804 = vrot.lane.b32.xlu0 %v1252, 1
        %v1805 = vpop.permute.xlu0 %1804
        %v1822 = vsel %vm1645, %v1727, %v1775
        %v1823 = vsel %vm1645, %v1729, %v1777
        %v1824 = vsel %vm1645, %v1731, %v1779
        %v1825 = vsel %vm1645, %v1733, %v1781
        %v1826 = vsel %vm1645, %v1735, %v1783
        %v1827 = vsel %vm1645, %v1737, %v1785
        %v1828 = vsel %vm1645, %v1739, %v1787
        %v1829 = vsel %vm1645, %v1741, %v1789
        %v1830 = vsel %vm1645, %v1743, %v1791
        %v1831 = vsel %vm1645, %v1745, %v1793
        %v1832 = vsel %vm1645, %v1747, %v1795
        %v1833 = vsel %vm1645, %v1749, %v1797
        %v1834 = vsel %vm1645, %v1751, %v1799
        %v1835 = vsel %vm1645, %v1753, %v1801
        %v1836 = vsel %vm1645, %v1755, %v1803
        %v1837 = vsel %vm1645, %v1757, %v1805
        %v1838 = vmul.f32 %v1822, %v1469
        %v1839 = vmul.f32 %v1823, %v1470
        %v1840 = vmul.f32 %v1824, %v1471
        %v1841 = vmul.f32 %v1825, %v1472
        %v1842 = vmul.f32 %v1826, %v1473
        %v1843 = vmul.f32 %v1827, %v1474
        %v1844 = vmul.f32 %v1828, %v1475
        %v1845 = vmul.f32 %v1829, %v1476
        %v1846 = vmul.f32 %v1830, %v1477
        %v1847 = vmul.f32 %v1831, %v1478
        %v1848 = vmul.f32 %v1832, %v1479
        %v1849 = vmul.f32 %v1833, %v1480
        %v1850 = vmul.f32 %v1834, %v1481
        %v1851 = vmul.f32 %v1835, %v1482
        %v1852 = vmul.f32 %v1836, %v1483
        %v1853 = vmul.f32 %v1837, %v1484
        %v1854 = vadd.f32 %v1694, %v1838
        %v1855 = vadd.f32 %v1695, %v1839
        %v1856 = vadd.f32 %v1696, %v1840
        %v1857 = vadd.f32 %v1697, %v1841
        %v1858 = vadd.f32 %v1698, %v1842
        %v1859 = vadd.f32 %v1699, %v1843
        %v1860 = vadd.f32 %v1700, %v1844
        %v1861 = vadd.f32 %v1701, %v1845
        %v1862 = vadd.f32 %v1702, %v1846
        %v1863 = vadd.f32 %v1703, %v1847
        %v1864 = vadd.f32 %v1704, %v1848
        %v1865 = vadd.f32 %v1705, %v1849
        %v1866 = vadd.f32 %v1706, %v1850
        %v1867 = vadd.f32 %v1707, %v1851
        %v1868 = vadd.f32 %v1708, %v1852
        %v1869 = vadd.f32 %v1709, %v1853
        %v1870 = vpack.c.bf16 %v1679, %v1678
        %v1871 = vpack.c.bf16 %v1681, %v1680
        %v1872 = vpack.c.bf16 %v1683, %v1682
        %v1873 = vpack.c.bf16 %v1685, %v1684
        %v1874 = vpack.c.bf16 %v1687, %v1686
        %v1875 = vpack.c.bf16 %v1689, %v1688
        %v1876 = vpack.c.bf16 %v1691, %v1690
        %v1877 = vpack.c.bf16 %v1693, %v1692
        %v1886 = vunpack.c.l.b16 %v1870
        %v1887 = vunpack.c.h.b16 %v1870
        %v1888 = vunpack.c.l.b16 %v1871
        %v1889 = vunpack.c.h.b16 %v1871
        %v1890 = vunpack.c.l.b16 %v1872
        %v1891 = vunpack.c.h.b16 %v1872
        %v1892 = vunpack.c.l.b16 %v1873
        %v1893 = vunpack.c.h.b16 %v1873
        %v1894 = vunpack.c.l.b16 %v1874
        %v1895 = vunpack.c.h.b16 %v1874
        %v1896 = vunpack.c.l.b16 %v1875
        %v1897 = vunpack.c.h.b16 %v1875
        %v1898 = vunpack.c.l.b16 %v1876
        %v1899 = vunpack.c.h.b16 %v1876
        %v1900 = vunpack.c.l.b16 %v1877
        %v1901 = vunpack.c.h.b16 %v1877
        %v1902 = vpack.c.b16 %v1886, %v1886
        %v1903 = vpack.c.b16 %v1887, %v1887
        %v1904 = vpack.c.b16 %v1888, %v1888
        %v1905 = vpack.c.b16 %v1889, %v1889
        %v1906 = vpack.c.b16 %v1890, %v1890
        %v1907 = vpack.c.b16 %v1891, %v1891
        %v1908 = vpack.c.b16 %v1892, %v1892
        %v1909 = vpack.c.b16 %v1893, %v1893
        %v1910 = vpack.c.b16 %v1894, %v1894
        %v1911 = vpack.c.b16 %v1895, %v1895
        %v1912 = vpack.c.b16 %v1896, %v1896
        %v1913 = vpack.c.b16 %v1897, %v1897
        %v1914 = vpack.c.b16 %v1898, %v1898
        %v1915 = vpack.c.b16 %v1899, %v1899
        %v1916 = vpack.c.b16 %v1900, %v1900
        %v1917 = vpack.c.b16 %v1901, %v1901
        %1934 = vst [vmem:[%s692] sm:$0xf] %v1902
        %1935 = vst [vmem:[%s692 + $0x4] sm:$0xf] %v1903
        %1936 = vst [vmem:[%s692 + $0x8] sm:$0xf] %v1904
        %1937 = vst [vmem:[%s692 + $0xc] sm:$0xf] %v1905
        %1938 = vst [vmem:[%s692 + $0x10] sm:$0xf] %v1906
        %1939 = vst [vmem:[%s692 + $0x14] sm:$0xf] %v1907
        %1940 = vst [vmem:[%s692 + $0x18] sm:$0xf] %v1908
        %1941 = vst [vmem:[%s692 + $0x1c] sm:$0xf] %v1909
        %1942 = vst [vmem:[%s692 + $0x20] sm:$0xf] %v1910
        %1943 = vst [vmem:[%s692 + $0x24] sm:$0xf] %v1911
        %1944 = vst [vmem:[%s692 + $0x28] sm:$0xf] %v1912
        %1945 = vst [vmem:[%s692 + $0x2c] sm:$0xf] %v1913
        %1946 = vst [vmem:[%s692 + $0x30] sm:$0xf] %v1914
        %1947 = vst [vmem:[%s692 + $0x34] sm:$0xf] %v1915
        %1948 = vst [vmem:[%s692 + $0x38] sm:$0xf] %v1916
        %1949 = vst [vmem:[%s692 + $0x3c] sm:$0xf] %v1917
        %1950 = vst [vmem:[%s699] sm:$0xff] %v965
        %1951 = vst [vmem:[%s699 + $0x8] sm:$0xff] %v969
        %1952 = vst [vmem:[%s699 + $0x10] sm:$0xff] %v975
        %1953 = vst [vmem:[%s699 + $0x18] sm:$0xff] %v979
        %1954 = vst [vmem:[%s699 + $0x20] sm:$0xff] %v985
        %1955 = vst [vmem:[%s699 + $0x28] sm:$0xff] %v989
        %1956 = vst [vmem:[%s699 + $0x30] sm:$0xff] %v995
        %1957 = vst [vmem:[%s699 + $0x38] sm:$0xff] %v999
        %1958 = vst [vmem:[%s699 + $0x40] sm:$0xff] %v1005
        %1959 = vst [vmem:[%s699 + $0x48] sm:$0xff] %v1009
        %1960 = vst [vmem:[%s699 + $0x50] sm:$0xff] %v1015
        %1961 = vst [vmem:[%s699 + $0x58] sm:$0xff] %v1019
        %1962 = vst [vmem:[%s699 + $0x60] sm:$0xff] %v1025
        %1963 = vst [vmem:[%s699 + $0x68] sm:$0xff] %v1029
        %1964 = vst [vmem:[%s699 + $0x70] sm:$0xff] %v1035
        %1965 = vst [vmem:[%s699 + $0x78] sm:$0xff] %v1039
        %v1966 = vpack.c.bf16 %v1855, %v1854
        %v1967 = vpack.c.bf16 %v1857, %v1856
        %v1968 = vpack.c.bf16 %v1859, %v1858
        %v1969 = vpack.c.bf16 %v1861, %v1860
        %v1970 = vpack.c.bf16 %v1863, %v1862
        %v1971 = vpack.c.bf16 %v1865, %v1864
        %v1972 = vpack.c.bf16 %v1867, %v1866
        %v1973 = vpack.c.bf16 %v1869, %v1868
        %v1982 = vunpack.c.l.b16 %v1966
        %v1983 = vunpack.c.h.b16 %v1966
        %v1984 = vunpack.c.l.b16 %v1967
        %v1985 = vunpack.c.h.b16 %v1967
        %v1986 = vunpack.c.l.b16 %v1968
        %v1987 = vunpack.c.h.b16 %v1968
        %v1988 = vunpack.c.l.b16 %v1969
        %v1989 = vunpack.c.h.b16 %v1969
        %v1990 = vunpack.c.l.b16 %v1970
        %v1991 = vunpack.c.h.b16 %v1970
        %v1992 = vunpack.c.l.b16 %v1971
        %v1993 = vunpack.c.h.b16 %v1971
        %v1994 = vunpack.c.l.b16 %v1972
        %v1995 = vunpack.c.h.b16 %v1972
        %v1996 = vunpack.c.l.b16 %v1973
        %v1997 = vunpack.c.h.b16 %v1973
        %v1998 = vpack.c.b16 %v1982, %v1982
        %v1999 = vpack.c.b16 %v1983, %v1983
        %v2000 = vpack.c.b16 %v1984, %v1984
        %v2001 = vpack.c.b16 %v1985, %v1985
        %v2002 = vpack.c.b16 %v1986, %v1986
        %v2003 = vpack.c.b16 %v1987, %v1987
        %v2004 = vpack.c.b16 %v1988, %v1988
        %v2005 = vpack.c.b16 %v1989, %v1989
        %v2006 = vpack.c.b16 %v1990, %v1990
        %v2007 = vpack.c.b16 %v1991, %v1991
        %v2008 = vpack.c.b16 %v1992, %v1992
        %v2009 = vpack.c.b16 %v1993, %v1993
        %v2010 = vpack.c.b16 %v1994, %v1994
        %v2011 = vpack.c.b16 %v1995, %v1995
        %v2012 = vpack.c.b16 %v1996, %v1996
        %v2013 = vpack.c.b16 %v1997, %v1997
        %2030 = vst [vmem:[%s706] sm:$0xf] %v1998
        %2031 = vst [vmem:[%s706 + $0x4] sm:$0xf] %v1999
        %2032 = vst [vmem:[%s706 + $0x8] sm:$0xf] %v2000
        %2033 = vst [vmem:[%s706 + $0xc] sm:$0xf] %v2001
        %2034 = vst [vmem:[%s706 + $0x10] sm:$0xf] %v2002
        %2035 = vst [vmem:[%s706 + $0x14] sm:$0xf] %v2003
        %2036 = vst [vmem:[%s706 + $0x18] sm:$0xf] %v2004
        %2037 = vst [vmem:[%s706 + $0x1c] sm:$0xf] %v2005
        %2038 = vst [vmem:[%s706 + $0x20] sm:$0xf] %v2006
        %2039 = vst [vmem:[%s706 + $0x24] sm:$0xf] %v2007
        %2040 = vst [vmem:[%s706 + $0x28] sm:$0xf] %v2008
        %2041 = vst [vmem:[%s706 + $0x2c] sm:$0xf] %v2009
        %2042 = vst [vmem:[%s706 + $0x30] sm:$0xf] %v2010
        %2043 = vst [vmem:[%s706 + $0x34] sm:$0xf] %v2011
        %2044 = vst [vmem:[%s706 + $0x38] sm:$0xf] %v2012
        %2045 = vst [vmem:[%s706 + $0x3c] sm:$0xf] %v2013
        %v2046 = vpack.c.bf16 %v1410, %v1407
        %v2047 = vpack.c.bf16 %v1418, %v1415
        %v2048 = vpack.c.bf16 %v1426, %v1423
        %v2049 = vpack.c.bf16 %v1434, %v1431
        %v2050 = vpack.c.bf16 %v1442, %v1439
        %v2051 = vpack.c.bf16 %v1450, %v1447
        %v2052 = vpack.c.bf16 %v1458, %v1455
        %v2053 = vpack.c.bf16 %v1466, %v1463
        %v2062 = vunpack.c.l.b16 %v2046
        %v2063 = vunpack.c.h.b16 %v2046
        %v2064 = vunpack.c.l.b16 %v2047
        %v2065 = vunpack.c.h.b16 %v2047
        %v2066 = vunpack.c.l.b16 %v2048
        %v2067 = vunpack.c.h.b16 %v2048
        %v2068 = vunpack.c.l.b16 %v2049
        %v2069 = vunpack.c.h.b16 %v2049
        %v2070 = vunpack.c.l.b16 %v2050
        %v2071 = vunpack.c.h.b16 %v2050
        %v2072 = vunpack.c.l.b16 %v2051
        %v2073 = vunpack.c.h.b16 %v2051
        %v2074 = vunpack.c.l.b16 %v2052
        %v2075 = vunpack.c.h.b16 %v2052
        %v2076 = vunpack.c.l.b16 %v2053
        %v2077 = vunpack.c.h.b16 %v2053
        %v2078 = vpack.c.b16 %v2062, %v2062
        %v2079 = vpack.c.b16 %v2063, %v2063
        %v2080 = vpack.c.b16 %v2064, %v2064
        %v2081 = vpack.c.b16 %v2065, %v2065
        %v2082 = vpack.c.b16 %v2066, %v2066
        %v2083 = vpack.c.b16 %v2067, %v2067
        %v2084 = vpack.c.b16 %v2068, %v2068
        %v2085 = vpack.c.b16 %v2069, %v2069
        %v2086 = vpack.c.b16 %v2070, %v2070
        %v2087 = vpack.c.b16 %v2071, %v2071
        %v2088 = vpack.c.b16 %v2072, %v2072
        %v2089 = vpack.c.b16 %v2073, %v2073
        %v2090 = vpack.c.b16 %v2074, %v2074
        %v2091 = vpack.c.b16 %v2075, %v2075
        %v2092 = vpack.c.b16 %v2076, %v2076
        %v2093 = vpack.c.b16 %v2077, %v2077
        %2110 = vst [vmem:[%s713] sm:$0xf] %v2078
        %2111 = vst [vmem:[%s713 + $0x4] sm:$0xf] %v2079
        %2112 = vst [vmem:[%s713 + $0x8] sm:$0xf] %v2080
        %2113 = vst [vmem:[%s713 + $0xc] sm:$0xf] %v2081
        %2114 = vst [vmem:[%s713 + $0x10] sm:$0xf] %v2082
        %2115 = vst [vmem:[%s713 + $0x14] sm:$0xf] %v2083
        %2116 = vst [vmem:[%s713 + $0x18] sm:$0xf] %v2084
        %2117 = vst [vmem:[%s713 + $0x1c] sm:$0xf] %v2085
        %2118 = vst [vmem:[%s713 + $0x20] sm:$0xf] %v2086
        %2119 = vst [vmem:[%s713 + $0x24] sm:$0xf] %v2087
        %2120 = vst [vmem:[%s713 + $0x28] sm:$0xf] %v2088
        %2121 = vst [vmem:[%s713 + $0x2c] sm:$0xf] %v2089
        %2122 = vst [vmem:[%s713 + $0x30] sm:$0xf] %v2090
        %2123 = vst [vmem:[%s713 + $0x34] sm:$0xf] %v2091
        %2124 = vst [vmem:[%s713 + $0x38] sm:$0xf] %v2092
        %2125 = vst [vmem:[%s713 + $0x3c] sm:$0xf] %v2093
        %s2126 = sand.u32 %s305, 1
        %s2127 = scalar_lea.sflag [#allocation4], %s2126
        %s2128 = sand.u32 %s305, 1
        %s2129 = smul.addr %s2128, 64
        %s2130 = scalar_lea.vmem [#allocation15], %s2129
        %s2131 = sand.u32 %s42, 1
        %s2132 = scalar_lea.sflag [#allocation17], %s2131
        %s2133 = sand.u32 %s333, 1
        %s2134 = smul.addr %s2133, 128
        %s2135 = scalar_lea.vmem [#allocation16], %s2134
        %s2136 = sand.u32 %s42, 1
        %s2137 = scalar_lea.sflag [#allocation17], %s2136
        %s2138 = sand.u32 %s361, 1
        %s2139 = smul.addr %s2138, 64
        %s2140 = scalar_lea.vmem [#allocation18], %s2139
        %s2141 = sand.u32 %s389, 1
        %s2142 = scalar_lea.sflag [#allocation20], %s2141
        %s2143 = sand.u32 %s389, 1
        %s2144 = smul.addr %s2143, 64
        %s2145 = scalar_lea.vmem [#allocation19], %s2144
        // Predicated region
        $region93: #{tpu_custom_call.1} parent=59 // pred_check
          %p2146 = pneg %p315
        $region94: #{tpu_custom_call.1} parent=59 // pred_check_branch
          %2148 = sbr.rel (%p2146) target = $region96
        $region95: #{tpu_custom_call.1} parent=59 // pred_region
          %s2149 = smul.u32 16, %s47
          %s2151 = ssub.s32 1024, 1024
          %2152 = vsyncadd %s2127, %s2151
          %s2153 = smul.addr %s46, 32
          %s2154 = sadd.s32 %s2149, %s2153
          %s2155 = smul.addr %s2154, 64
          %s2156 = scalar_lea.hbm %s10, %s2155
          %s2157 = sshll.u32 %s2130, 4
          %s2158 = int_to_ptr.vmem [resolvable:$true] %s2157
          %2163 = dma.vmem_to_hbm [thread:$0]  %s2158, 1024, %s2156, %s2127, 64, 64, 4
        $region96: #{tpu_custom_call.1} parent=59 // pred_fallthru
          _
        // Predicated region
        $region97: #{tpu_custom_call.1} parent=59 // pred_check
          %p2164 = pneg %p343
        $region98: #{tpu_custom_call.1} parent=59 // pred_check_branch
          %2166 = sbr.rel (%p2164) target = $region100
        $region99: #{tpu_custom_call.1} parent=59 // pred_region
          %s2167 = smul.u32 16, %s47
          %s2169 = ssub.s32 2048, 2048
          %2170 = vsyncadd %s2132, %s2169
          %s2171 = smul.addr %s46, 32
          %s2172 = sadd.s32 %s2167, %s2171
          %s2173 = smul.addr %s2172, 128
          %s2174 = scalar_lea.hbm %s11, %s2173
          %s2175 = sshll.u32 %s2135, 4
          %s2176 = int_to_ptr.vmem [resolvable:$true] %s2175
          %2181 = dma.vmem_to_hbm [thread:$0]  %s2176, 2048, %s2174, %s2132, 128, 128, 8
        $region100: #{tpu_custom_call.1} parent=59 // pred_fallthru
          _
        // Predicated region
        $region101: #{tpu_custom_call.1} parent=59 // pred_check
          %p2182 = pneg %p371
        $region102: #{tpu_custom_call.1} parent=59 // pred_check_branch
          %2184 = sbr.rel (%p2182) target = $region104
        $region103: #{tpu_custom_call.1} parent=59 // pred_region
          %s2185 = smul.u32 16, %s47
          %s2187 = ssub.s32 1024, 1024
          %2188 = vsyncadd %s2137, %s2187
          %s2189 = smul.addr %s46, 32
          %s2190 = sadd.s32 %s2185, %s2189
          %s2191 = smul.addr %s2190, 64
          %s2192 = scalar_lea.hbm %s12, %s2191
          %s2193 = sshll.u32 %s2140, 4
          %s2194 = int_to_ptr.vmem [resolvable:$true] %s2193
          %2199 = dma.vmem_to_hbm [thread:$0]  %s2194, 1024, %s2192, %s2137, 64, 64, 4
        $region104: #{tpu_custom_call.1} parent=59 // pred_fallthru
          _
        // Predicated region
        $region105: #{tpu_custom_call.1} parent=59 // pred_check
          %p2200 = pneg %p399
        $region106: #{tpu_custom_call.1} parent=59 // pred_check_branch
          %2202 = sbr.rel (%p2200) target = $region108
        $region107: #{tpu_custom_call.1} parent=59 // pred_region
          %s2203 = smul.u32 16, %s47
          %s2205 = ssub.s32 1024, 1024
          %2206 = vsyncadd %s2142, %s2205
          %s2207 = smul.addr %s46, 32
          %s2208 = sadd.s32 %s2203, %s2207
          %s2209 = smul.addr %s2208, 64
          %s2210 = scalar_lea.hbm %s13, %s2209
          %s2211 = sshll.u32 %s2145, 4
          %s2212 = int_to_ptr.vmem [resolvable:$true] %s2211
          %2217 = dma.vmem_to_hbm [thread:$0]  %s2212, 1024, %s2210, %s2142, 64, 64, 4
        $region108: #{tpu_custom_call.1} parent=59 // pred_fallthru
          _
      $region60: #{tpu_custom_call.1} parent=5 // pred_fallthru
        _
      %p2218 = scmp.le.s32.totalorder 2, %s37
      // Predicated region
      $region109: #{tpu_custom_call.1} parent=5 // pred_check
        %p2219 = pneg %p2218
      $region110: #{tpu_custom_call.1} parent=5 // pred_check_branch
        %2221 = sbr.rel (%p2219) target = $region112
      $region111: #{tpu_custom_call.1} parent=5 // pred_region
        %s2222 = ssub.s32 %s37, 2
        // Predicated region
        $region113: #{tpu_custom_call.1} parent=111 // pred_check
          %p2223 = pneg %p321
        $region114: #{tpu_custom_call.1} parent=111 // pred_check_branch
          %2225 = sbr.rel (%p2223) target = $region116
        $region115: #{tpu_custom_call.1} parent=111 // pred_region
          %s2226 = sand.u32 %s306, 1
          %s2227 = scalar_lea.sflag [#allocation4], %s2226
          %s2228 = sand.u32 %s306, 1
          %s2229 = smul.addr %s2228, 64
          %s2230 = scalar_lea.vmem [#allocation15], %s2229
          %2231 = dma.done %s2227, 1024
        $region116: #{tpu_custom_call.1} parent=111 // pred_fallthru
          _
        // Predicated region
        $region117: #{tpu_custom_call.1} parent=111 // pred_check
          %p2232 = pneg %p349
        $region118: #{tpu_custom_call.1} parent=111 // pred_check_branch
          %2234 = sbr.rel (%p2232) target = $region120
        $region119: #{tpu_custom_call.1} parent=111 // pred_region
          %s2235 = sand.u32 %s43, 1
          %s2236 = scalar_lea.sflag [#allocation17], %s2235
          %s2237 = sand.u32 %s334, 1
          %s2238 = smul.addr %s2237, 128
          %s2239 = scalar_lea.vmem [#allocation16], %s2238
          %2240 = dma.done %s2236, 2048
        $region120: #{tpu_custom_call.1} parent=111 // pred_fallthru
          _
        // Predicated region
        $region121: #{tpu_custom_call.1} parent=111 // pred_check
          %p2241 = pneg %p377
        $region122: #{tpu_custom_call.1} parent=111 // pred_check_branch
          %2243 = sbr.rel (%p2241) target = $region124
        $region123: #{tpu_custom_call.1} parent=111 // pred_region
          %s2244 = sand.u32 %s43, 1
          %s2245 = scalar_lea.sflag [#allocation17], %s2244
          %s2246 = sand.u32 %s362, 1
          %s2247 = smul.addr %s2246, 64
          %s2248 = scalar_lea.vmem [#allocation18], %s2247
          %2249 = dma.done %s2245, 1024
        $region124: #{tpu_custom_call.1} parent=111 // pred_fallthru
          _
        // Predicated region
        $region125: #{tpu_custom_call.1} parent=111 // pred_check
          %p2250 = pneg %p405
        $region126: #{tpu_custom_call.1} parent=111 // pred_check_branch
          %2252 = sbr.rel (%p2250) target = $region128
        $region127: #{tpu_custom_call.1} parent=111 // pred_region
          %s2253 = sand.u32 %s390, 1
          %s2254 = scalar_lea.sflag [#allocation20], %s2253
          %s2255 = sand.u32 %s390, 1
          %s2256 = smul.addr %s2255, 64
          %s2257 = scalar_lea.vmem [#allocation19], %s2256
          %2258 = dma.done %s2254, 1024
        $region128: #{tpu_custom_call.1} parent=111 // pred_fallthru
          _
      $region112: #{tpu_custom_call.1} parent=5 // pred_fallthru
        _
    $region6: #{tpu_custom_call.1} parent=1 // loop_footer
      %s41 = sadd.s32 1, %s37
    $region7: #{tpu_custom_call.1} parent=1 // loop_footer_branch
      %36 = sbr.rel target = $region3
    $region8: #{tpu_custom_call.1} parent=1 // loop_exit
      _
    %2259 = vsyncpa [#allocation3], 1
    %s2260 = scalar_lea.sflag [#allocation3], 1
    %2261 = vsyncpa %s2260, 1
    %2262 = vsyncpa [#allocation6], 1
    %s2263 = scalar_lea.sflag [#allocation6], 1
    %2264 = vsyncpa %s2263, 1
    %2265 = vsyncpa [#allocation9], 1
    %2266 = vsyncpa [#allocation12], 1
    %2267 = vsyncpa [#allocation4], 1
    %s2268 = scalar_lea.sflag [#allocation4], 1
    %2269 = vsyncpa %s2268, 1
    %2270 = vsyncpa [#allocation17], 1
    %s2271 = scalar_lea.sflag [#allocation17], 1
    %2272 = vsyncpa %s2271, 1
    %2273 = vsyncpa [#allocation20], 1
    %s2274 = scalar_lea.sflag [#allocation20], 1
    %2275 = vsyncpa %s2274, 1

</llo_original>
